<compile_context>
chip_gen: v7x
topology: tpu7x:2x2x1
jax: 0.10.0
libtpu: 0.0.40
codegen_flags: <defaults>
</compile_context>

<pallas_src>
import functools

import jax
import jax.numpy as jnp
from jax.experimental import pallas as pl
from jax.experimental.pallas import tpu as pltpu

NEG_INF = -jnp.inf


# --------------------------------------------------------------------------
# Fused kernel: stacked-branch GRU + masked time-max + unsort + concat + head
# --------------------------------------------------------------------------
def fused_text_model_kernel(des_x_ref, act_x_ref, des_len_ref, act_len_ref,
                            h0_ref, wih_ref, whh_ref, bih_ref, bhhn_ref,
                            idx_ref, wbase_ref, bbase_ref, out_ref, gi_ref,
                            *, T, B, H):
    # des_x_ref: (T, B, E)   des branch embeddings (time-major)
    # act_x_ref: (T, B, E)   act branch embeddings
    # *_len_ref: (B, 1)      int32 sequence lengths
    # h0_ref:    (B, H)      encoder_init_hidden (shared by all branches)
    # wih_ref:   (E, 3H)     W_ih^T, gates r|z|n packed along lanes
    # whh_ref:   (H, 3H)     W_hh^T, gates packed along lanes
    # bih_ref:   (1, 3H)     b_ih with b_hh folded in for the r and z gates
    # bhhn_ref:  (1, H)      b_hh for the n gate (must stay inside the loop)
    # idx_ref:   (3B, 1)     int32 row-select indices into the stacked pool:
    #                        [des_unsort | ind_unsort | B + act_unsort]
    # wbase_ref: (3, H, C)   base Linear weight, split per pooled segment, transposed
    # bbase_ref: (1, C)
    # out_ref:   (B, C)      scores
    # gi_ref:    (T*2B, 3H)  VMEM scratch for the hoisted input projection
    BB = 2 * B
    H2 = 2 * H
    H3 = 3 * H

    # ---- prologue: stack branches, ONE hoisted input projection matmul ----
    x = jnp.concatenate([des_x_ref[...], act_x_ref[...]], axis=1)   # (T, 2B, E)
    x = x.reshape(T * BB, x.shape[-1])                              # (T*2B, E)
    gi_ref[...] = (jnp.dot(x, wih_ref[...], preferred_element_type=jnp.float32)
                   + bih_ref[...])                                  # (T*2B, 3H)

    lens = jnp.concatenate([des_len_ref[...], act_len_ref[...]], axis=0)  # (2B,1)
    whh = whh_ref[...]                                              # (H, 3H)
    bhh_n = bhhn_ref[...]                                           # (1, H)

    h0 = h0_ref[...]
    h = jnp.concatenate([h0, h0], axis=0)                           # (2B, H)
    mx = jnp.full((BB, H), NEG_INF, dtype=jnp.float32)

    # ---- fully unrolled recurrence: ONE MXU push per timestep ----
    for t in range(T):
        gi_t = gi_ref[t * BB:(t + 1) * BB, :]                       # (2B, 3H)
        gh = jnp.dot(h, whh, preferred_element_type=jnp.float32)    # (2B, 3H)
        s = gi_t + gh                                               # biases already in gi
        r = jax.nn.sigmoid(s[:, 0:H])
        z = jax.nn.sigmoid(s[:, H:H2])
        n = jnp.tanh(gi_t[:, H2:H3] + r * (gh[:, H2:H3] + bhh_n))
        h_new = (1.0 - z) * n + z * h
        valid = t < lens                                            # (2B, 1) bool
        # padded positions become -inf (pad_packed_sequence(padding_value=-inf))
        mx = jnp.maximum(mx, jnp.where(valid, h_new, NEG_INF))
        # packed-sequence semantics: hidden state frozen beyond the length
        h = jnp.where(valid, h_new, h)

    # ---- epilogue: all three unsorts as ONE one-hot matmul (no gathers) ----
    # mx rows: [des_pool (=ind_pool, reference-code bug) | act_pool]
    col = jax.lax.broadcasted_iota(jnp.int32, (3 * B, BB), 1)
    perm = (idx_ref[...] == col).astype(jnp.float32)                # (3B, 2B)
    pooled = jnp.dot(perm, mx, preferred_element_type=jnp.float32)  # (3B, H)

    # ---- base head: Linear(3H -> C) as three summed (H, C) dots (no concat) ----
    out_ref[...] = (
        jnp.dot(pooled[0:B], wbase_ref[0], preferred_element_type=jnp.float32)
        + jnp.dot(pooled[B:2 * B], wbase_ref[1], preferred_element_type=jnp.float32)
        + jnp.dot(pooled[2 * B:3 * B], wbase_ref[2], preferred_element_type=jnp.float32)
        + bbase_ref[...])


# --------------------------------------------------------------------------
# One-time parameter preprocessing (outside jit): transposes, gate packing,
# bias folding (b_hh folded into the hoisted bias for the r and z gates).
# --------------------------------------------------------------------------
def prepare_params(params):
    H3, E = params["w_ih"].shape
    H = H3 // 3
    C = params["w_base"].shape[0]
    wih_all = params["w_ih"].T                                   # (E, 3H)
    whh_all = params["w_hh"].T                                    # (H, 3H)
    b_ih, b_hh = params["b_ih"], params["b_hh"]
    bih_comb = jnp.concatenate(
        [b_ih[:2 * H] + b_hh[:2 * H], b_ih[2 * H:]]).reshape(1, 3 * H)
    bhh_n = b_hh[2 * H:].reshape(1, H)
    wbase_t = jnp.transpose(params["w_base"].reshape(C, 3, H), (1, 2, 0))  # (3,H,C)
    bbase = params["b_base"].reshape(1, C)
    return {"wih_all": wih_all, "whh_all": whh_all, "bih_comb": bih_comb,
            "bhh_n": bhh_n, "wbase_t": wbase_t, "bbase": bbase}


# --------------------------------------------------------------------------
# Full forward — single fused pallas_call
# --------------------------------------------------------------------------
@jax.jit
def text_base_model_forward(prep, des_embed, des_len, des_unsort,
                            ind_embed, ind_len, ind_unsort,
                            act_embed, act_len, act_unsort, h0):
    # NOTE: ind_embed / ind_len are intentionally unused — the reference module
    # feeds des_embed to both the des and ind branches.
    del ind_embed, ind_len
    T, B, _ = des_embed.shape
    H = h0.shape[1]
    C = prep["bbase"].shape[1]

    # Combined row-select indices into the stacked pooled features (tiny).
    idx_all = jnp.concatenate([des_unsort.astype(jnp.int32),
                               ind_unsort.astype(jnp.int32),
                               act_unsort.astype(jnp.int32) + B]).reshape(3 * B, 1)

    vmem = pl.BlockSpec(memory_space=pltpu.MemorySpace.VMEM)
    kernel = functools.partial(fused_text_model_kernel, T=T, B=B, H=H)
    return pl.pallas_call(
        kernel,
        out_shape=jax.ShapeDtypeStruct((B, C), jnp.float32),
        in_specs=[vmem] * 12,
        out_specs=vmem,
        scratch_shapes=[pltpu.VMEM((T * 2 * B, 3 * H), jnp.float32)],
    )(des_embed, act_embed,
      des_len.astype(jnp.int32).reshape(B, 1),
      act_len.astype(jnp.int32).reshape(B, 1),
      h0,
      prep["wih_all"], prep["whh_all"], prep["bih_comb"], prep["bhh_n"],
      idx_all, prep["wbase_t"], prep["bbase"])


# --------------------------------------------------------------------------
# Pure-JAX reference (for correctness check)
# --------------------------------------------------------------------------
def gru_maxpool_ref(x, h0, w_ih, w_hh, b_ih, b_hh, lengths):
    T, B, _ = x.shape
    H = h0.shape[1]

    def step(carry, xt_t):
        h, mx = carry
        x_t, t = xt_t
        gi = x_t @ w_ih.T + b_ih
        gh = h @ w_hh.T + b_hh
        r = jax.nn.sigmoid(gi[:, :H] + gh[:, :H])
        z = jax.nn.sigmoid(gi[:, H:2 * H] + gh[:, H:2 * H])
        n = jnp.tanh(gi[:, 2 * H:] + r * gh[:, 2 * H:])
        h_new = (1.0 - z) * n + z * h
        valid = (t < lengths)[:, None]
        mx = jnp.maximum(mx, jnp.where(valid, h_new, NEG_INF))
        h = jnp.where(valid, h_new, h)
        return (h, mx), None

    mx0 = jnp.full((B, H), NEG_INF, dtype=jnp.float32)
    (_, mx), _ = jax.lax.scan(step, (h0, mx0), (x, jnp.arange(T)))
    return mx


def forward_ref(params, des_embed, des_len, des_unsort, ind_embed, ind_len,
                ind_unsort, act_embed, act_len, act_unsort, h0):
    w_ih, w_hh, b_ih, b_hh = (params["w_ih"], params["w_hh"],
                              params["b_ih"], params["b_hh"])
    des_pool = gru_maxpool_ref(des_embed, h0, w_ih, w_hh, b_ih, b_hh, des_len)
    ind_pool = gru_maxpool_ref(des_embed, h0, w_ih, w_hh, b_ih, b_hh, des_len)
    act_pool = gru_maxpool_ref(act_embed, h0, w_ih, w_hh, b_ih, b_hh, act_len)
    feats = jnp.concatenate(
        [des_pool[des_unsort], ind_pool[ind_unsort], act_pool[act_unsort]],
        axis=1)
    return feats @ params["w_base"].T + params["b_base"]


if __name__ == "__main__":
    # Small shapes consistent with the module's forward.
    T, B, E, H, C = 8, 8, 32, 32, 8  # seq, batch, embed dim, hidden, classes

    key = jax.random.PRNGKey(0)
    ks = jax.random.split(key, 12)

    params = {
        "w_ih":   0.2 * jax.random.normal(ks[0], (3 * H, E), jnp.float32),
        "w_hh":   0.2 * jax.random.normal(ks[1], (3 * H, H), jnp.float32),
        "b_ih":   0.1 * jax.random.normal(ks[2], (3 * H,), jnp.float32),
        "b_hh":   0.1 * jax.random.normal(ks[3], (3 * H,), jnp.float32),
        "w_base": 0.2 * jax.random.normal(ks[4], (C, 3 * H), jnp.float32),
        "b_base": 0.1 * jax.random.normal(ks[5], (C,), jnp.float32),
    }
    prep = prepare_params(params)   # one-time: gate-packed, pre-transposed weights

    des_embed = jax.random.normal(ks[6], (T, B, E), jnp.float32)
    ind_embed = jax.random.normal(ks[7], (T, B, E), jnp.float32)
    act_embed = jax.random.normal(ks[8], (T, B, E), jnp.float32)

    des_len = jax.random.randint(ks[9], (B,), 1, T + 1)   # lengths >= 1 assumed
    ind_len = des_len  # ind branch re-uses des inputs (reproducing original code)
    act_len = jax.random.randint(ks[10], (B,), 1, T + 1)

    des_unsort = jax.random.permutation(ks[11], B)
    ind_unsort = jax.random.permutation(jax.random.fold_in(key, 1), B)
    act_unsort = jax.random.permutation(jax.random.fold_in(key, 2), B)

    # encoder_init_hidden: (num_layers=1, B, H) in PyTorch; squeezed to (B, H).
    h0 = jnp.zeros((B, H), jnp.float32)

    scores = text_base_model_forward(prep, des_embed, des_len, des_unsort,
                                     ind_embed, ind_len, ind_unsort,
                                     act_embed, act_len, act_unsort, h0)
    scores = jax.block_until_ready(scores)

    ref = forward_ref(params, des_embed, des_len, des_unsort, ind_embed,
                      ind_len, ind_unsort, act_embed, act_len, act_unsort, h0)
    assert scores.shape == (B, C)
    assert jnp.allclose(scores, ref, rtol=1e-4, atol=1e-4), "mismatch vs reference"

    print("KERNEL_OK")
</pallas_src>

<mosaic_0001>
module attributes {stable_mosaic.version = 11 : i64} {
  func.func @fused_text_model_kernel(%arg0: memref<8x8x32xf32, #tpu.memory_space<vmem>>, %arg1: memref<8x8x32xf32, #tpu.memory_space<vmem>>, %arg2: memref<8x1xi32, #tpu.memory_space<vmem>>, %arg3: memref<8x1xi32, #tpu.memory_space<vmem>>, %arg4: memref<8x32xf32, #tpu.memory_space<vmem>>, %arg5: memref<32x96xf32, #tpu.memory_space<vmem>>, %arg6: memref<32x96xf32, #tpu.memory_space<vmem>>, %arg7: memref<1x96xf32, #tpu.memory_space<vmem>>, %arg8: memref<1x32xf32, #tpu.memory_space<vmem>>, %arg9: memref<24x1xi32, #tpu.memory_space<vmem>>, %arg10: memref<3x32x8xf32, #tpu.memory_space<vmem>>, %arg11: memref<1x8xf32, #tpu.memory_space<vmem>>, %arg12: memref<8x8xf32, #tpu.memory_space<vmem>>, %arg13: memref<128x96xf32, #tpu.memory_space<vmem>>) attributes {dimension_semantics = [], scalar_prefetch = 0 : i64, scratch_operands = 1 : i64, tpu.core_type = #tpu.core_type<tc>} {
    %c0 = arith.constant 0 : index
    %c0_0 = arith.constant 0 : index
    %c0_1 = arith.constant 0 : index
    %0 = vector.load %arg0[%c0, %c0_0, %c0_1] : memref<8x8x32xf32, #tpu.memory_space<vmem>>, vector<8x8x32xf32>
    %c0_2 = arith.constant 0 : index
    %c0_3 = arith.constant 0 : index
    %c0_4 = arith.constant 0 : index
    %1 = vector.load %arg1[%c0_2, %c0_3, %c0_4] : memref<8x8x32xf32, #tpu.memory_space<vmem>>, vector<8x8x32xf32>
    %2 = tpu.concatenate %0, %1 in 1 : vector<8x8x32xf32>, vector<8x8x32xf32> -> vector<8x16x32xf32>
    %3 = vector.shape_cast %2 : vector<8x16x32xf32> to vector<128x32xf32>
    %c0_5 = arith.constant 0 : index
    %c0_6 = arith.constant 0 : index
    %4 = vector.load %arg5[%c0_5, %c0_6] : memref<32x96xf32, #tpu.memory_space<vmem>>, vector<32x96xf32>
    %cst = arith.constant dense<0.000000e+00> : vector<128x96xf32>
    %5 = tpu.matmul %3, %4, %cst {dimension_numbers = #tpu.dot_dimension_numbers<[1], [0], [0], [1], [0, 0, 1, 1], [], []>} : vector<128x32xf32>, vector<32x96xf32>, vector<128x96xf32> -> vector<128x96xf32>
    %c0_7 = arith.constant 0 : index
    %c0_8 = arith.constant 0 : index
    %6 = vector.load %arg7[%c0_7, %c0_8] : memref<1x96xf32, #tpu.memory_space<vmem>>, vector<1x96xf32>
    %7 = vector.broadcast %6 : vector<1x96xf32> to vector<128x96xf32>
    %8 = arith.addf %5, %7 : vector<128x96xf32>
    %c0_9 = arith.constant 0 : index
    %c0_10 = arith.constant 0 : index
    %9 = vector.load %arg13[%c0_9, %c0_10] : memref<128x96xf32, #tpu.memory_space<vmem>>, vector<128x96xf32>
    tpu.vector_store %arg13[%c0_9, %c0_10], %8 {strides = array<i32>} : memref<128x96xf32, #tpu.memory_space<vmem>>, vector<128x96xf32>,
    %c0_11 = arith.constant 0 : index
    %c0_12 = arith.constant 0 : index
    %10 = vector.load %arg2[%c0_11, %c0_12] : memref<8x1xi32, #tpu.memory_space<vmem>>, vector<8x1xi32>
    %c0_13 = arith.constant 0 : index
    %c0_14 = arith.constant 0 : index
    %11 = vector.load %arg3[%c0_13, %c0_14] : memref<8x1xi32, #tpu.memory_space<vmem>>, vector<8x1xi32>
    %12 = tpu.concatenate %10, %11 in 0 : vector<8x1xi32>, vector<8x1xi32> -> vector<16x1xi32>
    %c0_15 = arith.constant 0 : index
    %c0_16 = arith.constant 0 : index
    %13 = vector.load %arg6[%c0_15, %c0_16] : memref<32x96xf32, #tpu.memory_space<vmem>>, vector<32x96xf32>
    %c0_17 = arith.constant 0 : index
    %c0_18 = arith.constant 0 : index
    %14 = vector.load %arg8[%c0_17, %c0_18] : memref<1x32xf32, #tpu.memory_space<vmem>>, vector<1x32xf32>
    %c0_19 = arith.constant 0 : index
    %c0_20 = arith.constant 0 : index
    %15 = vector.load %arg4[%c0_19, %c0_20] : memref<8x32xf32, #tpu.memory_space<vmem>>, vector<8x32xf32>
    %16 = tpu.concatenate %15, %15 in 0 : vector<8x32xf32>, vector<8x32xf32> -> vector<16x32xf32>
    %cst_21 = arith.constant 0xFF800000 : f32
    %17 = vector.broadcast %cst_21 : f32 to vector<16x32xf32>
    %c0_22 = arith.constant 0 : index
    %c0_23 = arith.constant 0 : index
    %18 = vector.load %arg13[%c0_22, %c0_23] : memref<128x96xf32, #tpu.memory_space<vmem>>, vector<16x96xf32>
    %cst_24 = arith.constant dense<0.000000e+00> : vector<16x96xf32>
    %19 = tpu.matmul %16, %13, %cst_24 {dimension_numbers = #tpu.dot_dimension_numbers<[1], [0], [0], [1], [0, 0, 1, 1], [], []>} : vector<16x32xf32>, vector<32x96xf32>, vector<16x96xf32> -> vector<16x96xf32>
    %20 = arith.addf %18, %19 : vector<16x96xf32>
    %21 = vector.extract_strided_slice %20 {offsets = [0, 0], sizes = [16, 32], strides = [1, 1]} : vector<16x96xf32> to vector<16x32xf32>
    %22 = arith.negf %21 : vector<16x32xf32>
    %23 = math.exp %22 : vector<16x32xf32>
    %cst_25 = arith.constant 1.000000e+00 : f32
    %24 = vector.broadcast %cst_25 : f32 to vector<16x32xf32>
    %25 = arith.addf %24, %23 : vector<16x32xf32>
    %26 = arith.divf %24, %25 : vector<16x32xf32>
    %27 = vector.extract_strided_slice %20 {offsets = [0, 32], sizes = [16, 32], strides = [1, 1]} : vector<16x96xf32> to vector<16x32xf32>
    %28 = arith.negf %27 : vector<16x32xf32>
    %29 = math.exp %28 : vector<16x32xf32>
    %cst_26 = arith.constant 1.000000e+00 : f32
    %30 = vector.broadcast %cst_26 : f32 to vector<16x32xf32>
    %31 = arith.addf %30, %29 : vector<16x32xf32>
    %32 = arith.divf %30, %31 : vector<16x32xf32>
    %33 = vector.extract_strided_slice %18 {offsets = [0, 64], sizes = [16, 32], strides = [1, 1]} : vector<16x96xf32> to vector<16x32xf32>
    %34 = vector.extract_strided_slice %19 {offsets = [0, 64], sizes = [16, 32], strides = [1, 1]} : vector<16x96xf32> to vector<16x32xf32>
    %35 = vector.broadcast %14 : vector<1x32xf32> to vector<16x32xf32>
    %36 = arith.addf %34, %35 : vector<16x32xf32>
    %37 = arith.mulf %26, %36 : vector<16x32xf32>
    %38 = arith.addf %33, %37 : vector<16x32xf32>
    %39 = math.tanh %38 : vector<16x32xf32>
    %cst_27 = arith.constant 1.000000e+00 : f32
    %40 = vector.broadcast %cst_27 : f32 to vector<16x32xf32>
    %41 = arith.subf %40, %32 : vector<16x32xf32>
    %42 = arith.mulf %41, %39 : vector<16x32xf32>
    %43 = arith.mulf %32, %16 : vector<16x32xf32>
    %44 = arith.addf %42, %43 : vector<16x32xf32>
    %c0_i32 = arith.constant 0 : i32
    %45 = vector.broadcast %c0_i32 : i32 to vector<16x1xi32>
    %46 = arith.cmpi sgt, %12, %45 : vector<16x1xi32>
    %cst_28 = arith.constant 0xFF800000 : f32
    %47 = vector.shape_cast %46 : vector<16x1xi1> to vector<16x1xi1>
    %48 = vector.broadcast %47 : vector<16x1xi1> to vector<16x32xi1>
    %49 = vector.broadcast %cst_28 : f32 to vector<16x32xf32>
    %50 = arith.select %48, %44, %49 : vector<16x32xi1>, vector<16x32xf32>
    %51 = arith.maximumf %17, %50 : vector<16x32xf32>
    %52 = vector.shape_cast %46 : vector<16x1xi1> to vector<16x1xi1>
    %53 = vector.broadcast %52 : vector<16x1xi1> to vector<16x32xi1>
    %54 = arith.select %53, %44, %16 : vector<16x32xi1>, vector<16x32xf32>
    %c16 = arith.constant 16 : index
    %c0_29 = arith.constant 0 : index
    %55 = vector.load %arg13[%c16, %c0_29] : memref<128x96xf32, #tpu.memory_space<vmem>>, vector<16x96xf32>
    %cst_30 = arith.constant dense<0.000000e+00> : vector<16x96xf32>
    %56 = tpu.matmul %54, %13, %cst_30 {dimension_numbers = #tpu.dot_dimension_numbers<[1], [0], [0], [1], [0, 0, 1, 1], [], []>} : vector<16x32xf32>, vector<32x96xf32>, vector<16x96xf32> -> vector<16x96xf32>
    %57 = arith.addf %55, %56 : vector<16x96xf32>
    %58 = vector.extract_strided_slice %57 {offsets = [0, 0], sizes = [16, 32], strides = [1, 1]} : vector<16x96xf32> to vector<16x32xf32>
    %59 = arith.negf %58 : vector<16x32xf32>
    %60 = math.exp %59 : vector<16x32xf32>
    %cst_31 = arith.constant 1.000000e+00 : f32
    %61 = vector.broadcast %cst_31 : f32 to vector<16x32xf32>
    %62 = arith.addf %61, %60 : vector<16x32xf32>
    %63 = arith.divf %61, %62 : vector<16x32xf32>
    %64 = vector.extract_strided_slice %57 {offsets = [0, 32], sizes = [16, 32], strides = [1, 1]} : vector<16x96xf32> to vector<16x32xf32>
    %65 = arith.negf %64 : vector<16x32xf32>
    %66 = math.exp %65 : vector<16x32xf32>
    %cst_32 = arith.constant 1.000000e+00 : f32
    %67 = vector.broadcast %cst_32 : f32 to vector<16x32xf32>
    %68 = arith.addf %67, %66 : vector<16x32xf32>
    %69 = arith.divf %67, %68 : vector<16x32xf32>
    %70 = vector.extract_strided_slice %55 {offsets = [0, 64], sizes = [16, 32], strides = [1, 1]} : vector<16x96xf32> to vector<16x32xf32>
    %71 = vector.extract_strided_slice %56 {offsets = [0, 64], sizes = [16, 32], strides = [1, 1]} : vector<16x96xf32> to vector<16x32xf32>
    %72 = vector.broadcast %14 : vector<1x32xf32> to vector<16x32xf32>
    %73 = arith.addf %71, %72 : vector<16x32xf32>
    %74 = arith.mulf %63, %73 : vector<16x32xf32>
    %75 = arith.addf %70, %74 : vector<16x32xf32>
    %76 = math.tanh %75 : vector<16x32xf32>
    %cst_33 = arith.constant 1.000000e+00 : f32
    %77 = vector.broadcast %cst_33 : f32 to vector<16x32xf32>
    %78 = arith.subf %77, %69 : vector<16x32xf32>
    %79 = arith.mulf %78, %76 : vector<16x32xf32>
    %80 = arith.mulf %69, %54 : vector<16x32xf32>
    %81 = arith.addf %79, %80 : vector<16x32xf32>
    %c1_i32 = arith.constant 1 : i32
    %82 = vector.broadcast %c1_i32 : i32 to vector<16x1xi32>
    %83 = arith.cmpi sgt, %12, %82 : vector<16x1xi32>
    %cst_34 = arith.constant 0xFF800000 : f32
    %84 = vector.shape_cast %83 : vector<16x1xi1> to vector<16x1xi1>
    %85 = vector.broadcast %84 : vector<16x1xi1> to vector<16x32xi1>
    %86 = vector.broadcast %cst_34 : f32 to vector<16x32xf32>
    %87 = arith.select %85, %81, %86 : vector<16x32xi1>, vector<16x32xf32>
    %88 = arith.maximumf %51, %87 : vector<16x32xf32>
    %89 = vector.shape_cast %83 : vector<16x1xi1> to vector<16x1xi1>
    %90 = vector.broadcast %89 : vector<16x1xi1> to vector<16x32xi1>
    %91 = arith.select %90, %81, %54 : vector<16x32xi1>, vector<16x32xf32>
    %c32 = arith.constant 32 : index
    %c0_35 = arith.constant 0 : index
    %92 = vector.load %arg13[%c32, %c0_35] : memref<128x96xf32, #tpu.memory_space<vmem>>, vector<16x96xf32>
    %cst_36 = arith.constant dense<0.000000e+00> : vector<16x96xf32>
    %93 = tpu.matmul %91, %13, %cst_36 {dimension_numbers = #tpu.dot_dimension_numbers<[1], [0], [0], [1], [0, 0, 1, 1], [], []>} : vector<16x32xf32>, vector<32x96xf32>, vector<16x96xf32> -> vector<16x96xf32>
    %94 = arith.addf %92, %93 : vector<16x96xf32>
    %95 = vector.extract_strided_slice %94 {offsets = [0, 0], sizes = [16, 32], strides = [1, 1]} : vector<16x96xf32> to vector<16x32xf32>
    %96 = arith.negf %95 : vector<16x32xf32>
    %97 = math.exp %96 : vector<16x32xf32>
    %cst_37 = arith.constant 1.000000e+00 : f32
    %98 = vector.broadcast %cst_37 : f32 to vector<16x32xf32>
    %99 = arith.addf %98, %97 : vector<16x32xf32>
    %100 = arith.divf %98, %99 : vector<16x32xf32>
    %101 = vector.extract_strided_slice %94 {offsets = [0, 32], sizes = [16, 32], strides = [1, 1]} : vector<16x96xf32> to vector<16x32xf32>
    %102 = arith.negf %101 : vector<16x32xf32>
    %103 = math.exp %102 : vector<16x32xf32>
    %cst_38 = arith.constant 1.000000e+00 : f32
    %104 = vector.broadcast %cst_38 : f32 to vector<16x32xf32>
    %105 = arith.addf %104, %103 : vector<16x32xf32>
    %106 = arith.divf %104, %105 : vector<16x32xf32>
    %107 = vector.extract_strided_slice %92 {offsets = [0, 64], sizes = [16, 32], strides = [1, 1]} : vector<16x96xf32> to vector<16x32xf32>
    %108 = vector.extract_strided_slice %93 {offsets = [0, 64], sizes = [16, 32], strides = [1, 1]} : vector<16x96xf32> to vector<16x32xf32>
    %109 = vector.broadcast %14 : vector<1x32xf32> to vector<16x32xf32>
    %110 = arith.addf %108, %109 : vector<16x32xf32>
    %111 = arith.mulf %100, %110 : vector<16x32xf32>
    %112 = arith.addf %107, %111 : vector<16x32xf32>
    %113 = math.tanh %112 : vector<16x32xf32>
    %cst_39 = arith.constant 1.000000e+00 : f32
    %114 = vector.broadcast %cst_39 : f32 to vector<16x32xf32>
    %115 = arith.subf %114, %106 : vector<16x32xf32>
    %116 = arith.mulf %115, %113 : vector<16x32xf32>
    %117 = arith.mulf %106, %91 : vector<16x32xf32>
    %118 = arith.addf %116, %117 : vector<16x32xf32>
    %c2_i32 = arith.constant 2 : i32
    %119 = vector.broadcast %c2_i32 : i32 to vector<16x1xi32>
    %120 = arith.cmpi sgt, %12, %119 : vector<16x1xi32>
    %cst_40 = arith.constant 0xFF800000 : f32
    %121 = vector.shape_cast %120 : vector<16x1xi1> to vector<16x1xi1>
    %122 = vector.broadcast %121 : vector<16x1xi1> to vector<16x32xi1>
    %123 = vector.broadcast %cst_40 : f32 to vector<16x32xf32>
    %124 = arith.select %122, %118, %123 : vector<16x32xi1>, vector<16x32xf32>
    %125 = arith.maximumf %88, %124 : vector<16x32xf32>
    %126 = vector.shape_cast %120 : vector<16x1xi1> to vector<16x1xi1>
    %127 = vector.broadcast %126 : vector<16x1xi1> to vector<16x32xi1>
    %128 = arith.select %127, %118, %91 : vector<16x32xi1>, vector<16x32xf32>
    %c48 = arith.constant 48 : index
    %c0_41 = arith.constant 0 : index
    %129 = vector.load %arg13[%c48, %c0_41] : memref<128x96xf32, #tpu.memory_space<vmem>>, vector<16x96xf32>
    %cst_42 = arith.constant dense<0.000000e+00> : vector<16x96xf32>
    %130 = tpu.matmul %128, %13, %cst_42 {dimension_numbers = #tpu.dot_dimension_numbers<[1], [0], [0], [1], [0, 0, 1, 1], [], []>} : vector<16x32xf32>, vector<32x96xf32>, vector<16x96xf32> -> vector<16x96xf32>
    %131 = arith.addf %129, %130 : vector<16x96xf32>
    %132 = vector.extract_strided_slice %131 {offsets = [0, 0], sizes = [16, 32], strides = [1, 1]} : vector<16x96xf32> to vector<16x32xf32>
    %133 = arith.negf %132 : vector<16x32xf32>
    %134 = math.exp %133 : vector<16x32xf32>
    %cst_43 = arith.constant 1.000000e+00 : f32
    %135 = vector.broadcast %cst_43 : f32 to vector<16x32xf32>
    %136 = arith.addf %135, %134 : vector<16x32xf32>
    %137 = arith.divf %135, %136 : vector<16x32xf32>
    %138 = vector.extract_strided_slice %131 {offsets = [0, 32], sizes = [16, 32], strides = [1, 1]} : vector<16x96xf32> to vector<16x32xf32>
    %139 = arith.negf %138 : vector<16x32xf32>
    %140 = math.exp %139 : vector<16x32xf32>
    %cst_44 = arith.constant 1.000000e+00 : f32
    %141 = vector.broadcast %cst_44 : f32 to vector<16x32xf32>
    %142 = arith.addf %141, %140 : vector<16x32xf32>
    %143 = arith.divf %141, %142 : vector<16x32xf32>
    %144 = vector.extract_strided_slice %129 {offsets = [0, 64], sizes = [16, 32], strides = [1, 1]} : vector<16x96xf32> to vector<16x32xf32>
    %145 = vector.extract_strided_slice %130 {offsets = [0, 64], sizes = [16, 32], strides = [1, 1]} : vector<16x96xf32> to vector<16x32xf32>
    %146 = vector.broadcast %14 : vector<1x32xf32> to vector<16x32xf32>
    %147 = arith.addf %145, %146 : vector<16x32xf32>
    %148 = arith.mulf %137, %147 : vector<16x32xf32>
    %149 = arith.addf %144, %148 : vector<16x32xf32>
    %150 = math.tanh %149 : vector<16x32xf32>
    %cst_45 = arith.constant 1.000000e+00 : f32
    %151 = vector.broadcast %cst_45 : f32 to vector<16x32xf32>
    %152 = arith.subf %151, %143 : vector<16x32xf32>
    %153 = arith.mulf %152, %150 : vector<16x32xf32>
    %154 = arith.mulf %143, %128 : vector<16x32xf32>
    %155 = arith.addf %153, %154 : vector<16x32xf32>
    %c3_i32 = arith.constant 3 : i32
    %156 = vector.broadcast %c3_i32 : i32 to vector<16x1xi32>
    %157 = arith.cmpi sgt, %12, %156 : vector<16x1xi32>
    %cst_46 = arith.constant 0xFF800000 : f32
    %158 = vector.shape_cast %157 : vector<16x1xi1> to vector<16x1xi1>
    %159 = vector.broadcast %158 : vector<16x1xi1> to vector<16x32xi1>
    %160 = vector.broadcast %cst_46 : f32 to vector<16x32xf32>
    %161 = arith.select %159, %155, %160 : vector<16x32xi1>, vector<16x32xf32>
    %162 = arith.maximumf %125, %161 : vector<16x32xf32>
    %163 = vector.shape_cast %157 : vector<16x1xi1> to vector<16x1xi1>
    %164 = vector.broadcast %163 : vector<16x1xi1> to vector<16x32xi1>
    %165 = arith.select %164, %155, %128 : vector<16x32xi1>, vector<16x32xf32>
    %c64 = arith.constant 64 : index
    %c0_47 = arith.constant 0 : index
    %166 = vector.load %arg13[%c64, %c0_47] : memref<128x96xf32, #tpu.memory_space<vmem>>, vector<16x96xf32>
    %cst_48 = arith.constant dense<0.000000e+00> : vector<16x96xf32>
    %167 = tpu.matmul %165, %13, %cst_48 {dimension_numbers = #tpu.dot_dimension_numbers<[1], [0], [0], [1], [0, 0, 1, 1], [], []>} : vector<16x32xf32>, vector<32x96xf32>, vector<16x96xf32> -> vector<16x96xf32>
    %168 = arith.addf %166, %167 : vector<16x96xf32>
    %169 = vector.extract_strided_slice %168 {offsets = [0, 0], sizes = [16, 32], strides = [1, 1]} : vector<16x96xf32> to vector<16x32xf32>
    %170 = arith.negf %169 : vector<16x32xf32>
    %171 = math.exp %170 : vector<16x32xf32>
    %cst_49 = arith.constant 1.000000e+00 : f32
    %172 = vector.broadcast %cst_49 : f32 to vector<16x32xf32>
    %173 = arith.addf %172, %171 : vector<16x32xf32>
    %174 = arith.divf %172, %173 : vector<16x32xf32>
    %175 = vector.extract_strided_slice %168 {offsets = [0, 32], sizes = [16, 32], strides = [1, 1]} : vector<16x96xf32> to vector<16x32xf32>
    %176 = arith.negf %175 : vector<16x32xf32>
    %177 = math.exp %176 : vector<16x32xf32>
    %cst_50 = arith.constant 1.000000e+00 : f32
    %178 = vector.broadcast %cst_50 : f32 to vector<16x32xf32>
    %179 = arith.addf %178, %177 : vector<16x32xf32>
    %180 = arith.divf %178, %179 : vector<16x32xf32>
    %181 = vector.extract_strided_slice %166 {offsets = [0, 64], sizes = [16, 32], strides = [1, 1]} : vector<16x96xf32> to vector<16x32xf32>
    %182 = vector.extract_strided_slice %167 {offsets = [0, 64], sizes = [16, 32], strides = [1, 1]} : vector<16x96xf32> to vector<16x32xf32>
    %183 = vector.broadcast %14 : vector<1x32xf32> to vector<16x32xf32>
    %184 = arith.addf %182, %183 : vector<16x32xf32>
    %185 = arith.mulf %174, %184 : vector<16x32xf32>
    %186 = arith.addf %181, %185 : vector<16x32xf32>
    %187 = math.tanh %186 : vector<16x32xf32>
    %cst_51 = arith.constant 1.000000e+00 : f32
    %188 = vector.broadcast %cst_51 : f32 to vector<16x32xf32>
    %189 = arith.subf %188, %180 : vector<16x32xf32>
    %190 = arith.mulf %189, %187 : vector<16x32xf32>
    %191 = arith.mulf %180, %165 : vector<16x32xf32>
    %192 = arith.addf %190, %191 : vector<16x32xf32>
    %c4_i32 = arith.constant 4 : i32
    %193 = vector.broadcast %c4_i32 : i32 to vector<16x1xi32>
    %194 = arith.cmpi sgt, %12, %193 : vector<16x1xi32>
    %cst_52 = arith.constant 0xFF800000 : f32
    %195 = vector.shape_cast %194 : vector<16x1xi1> to vector<16x1xi1>
    %196 = vector.broadcast %195 : vector<16x1xi1> to vector<16x32xi1>
    %197 = vector.broadcast %cst_52 : f32 to vector<16x32xf32>
    %198 = arith.select %196, %192, %197 : vector<16x32xi1>, vector<16x32xf32>
    %199 = arith.maximumf %162, %198 : vector<16x32xf32>
    %200 = vector.shape_cast %194 : vector<16x1xi1> to vector<16x1xi1>
    %201 = vector.broadcast %200 : vector<16x1xi1> to vector<16x32xi1>
    %202 = arith.select %201, %192, %165 : vector<16x32xi1>, vector<16x32xf32>
    %c80 = arith.constant 80 : index
    %c0_53 = arith.constant 0 : index
    %203 = vector.load %arg13[%c80, %c0_53] : memref<128x96xf32, #tpu.memory_space<vmem>>, vector<16x96xf32>
    %cst_54 = arith.constant dense<0.000000e+00> : vector<16x96xf32>
    %204 = tpu.matmul %202, %13, %cst_54 {dimension_numbers = #tpu.dot_dimension_numbers<[1], [0], [0], [1], [0, 0, 1, 1], [], []>} : vector<16x32xf32>, vector<32x96xf32>, vector<16x96xf32> -> vector<16x96xf32>
    %205 = arith.addf %203, %204 : vector<16x96xf32>
    %206 = vector.extract_strided_slice %205 {offsets = [0, 0], sizes = [16, 32], strides = [1, 1]} : vector<16x96xf32> to vector<16x32xf32>
    %207 = arith.negf %206 : vector<16x32xf32>
    %208 = math.exp %207 : vector<16x32xf32>
    %cst_55 = arith.constant 1.000000e+00 : f32
    %209 = vector.broadcast %cst_55 : f32 to vector<16x32xf32>
    %210 = arith.addf %209, %208 : vector<16x32xf32>
    %211 = arith.divf %209, %210 : vector<16x32xf32>
    %212 = vector.extract_strided_slice %205 {offsets = [0, 32], sizes = [16, 32], strides = [1, 1]} : vector<16x96xf32> to vector<16x32xf32>
    %213 = arith.negf %212 : vector<16x32xf32>
    %214 = math.exp %213 : vector<16x32xf32>
    %cst_56 = arith.constant 1.000000e+00 : f32
    %215 = vector.broadcast %cst_56 : f32 to vector<16x32xf32>
    %216 = arith.addf %215, %214 : vector<16x32xf32>
    %217 = arith.divf %215, %216 : vector<16x32xf32>
    %218 = vector.extract_strided_slice %203 {offsets = [0, 64], sizes = [16, 32], strides = [1, 1]} : vector<16x96xf32> to vector<16x32xf32>
    %219 = vector.extract_strided_slice %204 {offsets = [0, 64], sizes = [16, 32], strides = [1, 1]} : vector<16x96xf32> to vector<16x32xf32>
    %220 = vector.broadcast %14 : vector<1x32xf32> to vector<16x32xf32>
    %221 = arith.addf %219, %220 : vector<16x32xf32>
    %222 = arith.mulf %211, %221 : vector<16x32xf32>
    %223 = arith.addf %218, %222 : vector<16x32xf32>
    %224 = math.tanh %223 : vector<16x32xf32>
    %cst_57 = arith.constant 1.000000e+00 : f32
    %225 = vector.broadcast %cst_57 : f32 to vector<16x32xf32>
    %226 = arith.subf %225, %217 : vector<16x32xf32>
    %227 = arith.mulf %226, %224 : vector<16x32xf32>
    %228 = arith.mulf %217, %202 : vector<16x32xf32>
    %229 = arith.addf %227, %228 : vector<16x32xf32>
    %c5_i32 = arith.constant 5 : i32
    %230 = vector.broadcast %c5_i32 : i32 to vector<16x1xi32>
    %231 = arith.cmpi sgt, %12, %230 : vector<16x1xi32>
    %cst_58 = arith.constant 0xFF800000 : f32
    %232 = vector.shape_cast %231 : vector<16x1xi1> to vector<16x1xi1>
    %233 = vector.broadcast %232 : vector<16x1xi1> to vector<16x32xi1>
    %234 = vector.broadcast %cst_58 : f32 to vector<16x32xf32>
    %235 = arith.select %233, %229, %234 : vector<16x32xi1>, vector<16x32xf32>
    %236 = arith.maximumf %199, %235 : vector<16x32xf32>
    %237 = vector.shape_cast %231 : vector<16x1xi1> to vector<16x1xi1>
    %238 = vector.broadcast %237 : vector<16x1xi1> to vector<16x32xi1>
    %239 = arith.select %238, %229, %202 : vector<16x32xi1>, vector<16x32xf32>
    %c96 = arith.constant 96 : index
    %c0_59 = arith.constant 0 : index
    %240 = vector.load %arg13[%c96, %c0_59] : memref<128x96xf32, #tpu.memory_space<vmem>>, vector<16x96xf32>
    %cst_60 = arith.constant dense<0.000000e+00> : vector<16x96xf32>
    %241 = tpu.matmul %239, %13, %cst_60 {dimension_numbers = #tpu.dot_dimension_numbers<[1], [0], [0], [1], [0, 0, 1, 1], [], []>} : vector<16x32xf32>, vector<32x96xf32>, vector<16x96xf32> -> vector<16x96xf32>
    %242 = arith.addf %240, %241 : vector<16x96xf32>
    %243 = vector.extract_strided_slice %242 {offsets = [0, 0], sizes = [16, 32], strides = [1, 1]} : vector<16x96xf32> to vector<16x32xf32>
    %244 = arith.negf %243 : vector<16x32xf32>
    %245 = math.exp %244 : vector<16x32xf32>
    %cst_61 = arith.constant 1.000000e+00 : f32
    %246 = vector.broadcast %cst_61 : f32 to vector<16x32xf32>
    %247 = arith.addf %246, %245 : vector<16x32xf32>
    %248 = arith.divf %246, %247 : vector<16x32xf32>
    %249 = vector.extract_strided_slice %242 {offsets = [0, 32], sizes = [16, 32], strides = [1, 1]} : vector<16x96xf32> to vector<16x32xf32>
    %250 = arith.negf %249 : vector<16x32xf32>
    %251 = math.exp %250 : vector<16x32xf32>
    %cst_62 = arith.constant 1.000000e+00 : f32
    %252 = vector.broadcast %cst_62 : f32 to vector<16x32xf32>
    %253 = arith.addf %252, %251 : vector<16x32xf32>
    %254 = arith.divf %252, %253 : vector<16x32xf32>
    %255 = vector.extract_strided_slice %240 {offsets = [0, 64], sizes = [16, 32], strides = [1, 1]} : vector<16x96xf32> to vector<16x32xf32>
    %256 = vector.extract_strided_slice %241 {offsets = [0, 64], sizes = [16, 32], strides = [1, 1]} : vector<16x96xf32> to vector<16x32xf32>
    %257 = vector.broadcast %14 : vector<1x32xf32> to vector<16x32xf32>
    %258 = arith.addf %256, %257 : vector<16x32xf32>
    %259 = arith.mulf %248, %258 : vector<16x32xf32>
    %260 = arith.addf %255, %259 : vector<16x32xf32>
    %261 = math.tanh %260 : vector<16x32xf32>
    %cst_63 = arith.constant 1.000000e+00 : f32
    %262 = vector.broadcast %cst_63 : f32 to vector<16x32xf32>
    %263 = arith.subf %262, %254 : vector<16x32xf32>
    %264 = arith.mulf %263, %261 : vector<16x32xf32>
    %265 = arith.mulf %254, %239 : vector<16x32xf32>
    %266 = arith.addf %264, %265 : vector<16x32xf32>
    %c6_i32 = arith.constant 6 : i32
    %267 = vector.broadcast %c6_i32 : i32 to vector<16x1xi32>
    %268 = arith.cmpi sgt, %12, %267 : vector<16x1xi32>
    %cst_64 = arith.constant 0xFF800000 : f32
    %269 = vector.shape_cast %268 : vector<16x1xi1> to vector<16x1xi1>
    %270 = vector.broadcast %269 : vector<16x1xi1> to vector<16x32xi1>
    %271 = vector.broadcast %cst_64 : f32 to vector<16x32xf32>
    %272 = arith.select %270, %266, %271 : vector<16x32xi1>, vector<16x32xf32>
    %273 = arith.maximumf %236, %272 : vector<16x32xf32>
    %274 = vector.shape_cast %268 : vector<16x1xi1> to vector<16x1xi1>
    %275 = vector.broadcast %274 : vector<16x1xi1> to vector<16x32xi1>
    %276 = arith.select %275, %266, %239 : vector<16x32xi1>, vector<16x32xf32>
    %c112 = arith.constant 112 : index
    %c0_65 = arith.constant 0 : index
    %277 = vector.load %arg13[%c112, %c0_65] : memref<128x96xf32, #tpu.memory_space<vmem>>, vector<16x96xf32>
    %cst_66 = arith.constant dense<0.000000e+00> : vector<16x96xf32>
    %278 = tpu.matmul %276, %13, %cst_66 {dimension_numbers = #tpu.dot_dimension_numbers<[1], [0], [0], [1], [0, 0, 1, 1], [], []>} : vector<16x32xf32>, vector<32x96xf32>, vector<16x96xf32> -> vector<16x96xf32>
    %279 = arith.addf %277, %278 : vector<16x96xf32>
    %280 = vector.extract_strided_slice %279 {offsets = [0, 0], sizes = [16, 32], strides = [1, 1]} : vector<16x96xf32> to vector<16x32xf32>
    %281 = arith.negf %280 : vector<16x32xf32>
    %282 = math.exp %281 : vector<16x32xf32>
    %cst_67 = arith.constant 1.000000e+00 : f32
    %283 = vector.broadcast %cst_67 : f32 to vector<16x32xf32>
    %284 = arith.addf %283, %282 : vector<16x32xf32>
    %285 = arith.divf %283, %284 : vector<16x32xf32>
    %286 = vector.extract_strided_slice %279 {offsets = [0, 32], sizes = [16, 32], strides = [1, 1]} : vector<16x96xf32> to vector<16x32xf32>
    %287 = arith.negf %286 : vector<16x32xf32>
    %288 = math.exp %287 : vector<16x32xf32>
    %cst_68 = arith.constant 1.000000e+00 : f32
    %289 = vector.broadcast %cst_68 : f32 to vector<16x32xf32>
    %290 = arith.addf %289, %288 : vector<16x32xf32>
    %291 = arith.divf %289, %290 : vector<16x32xf32>
    %292 = vector.extract_strided_slice %277 {offsets = [0, 64], sizes = [16, 32], strides = [1, 1]} : vector<16x96xf32> to vector<16x32xf32>
    %293 = vector.extract_strided_slice %278 {offsets = [0, 64], sizes = [16, 32], strides = [1, 1]} : vector<16x96xf32> to vector<16x32xf32>
    %294 = vector.broadcast %14 : vector<1x32xf32> to vector<16x32xf32>
    %295 = arith.addf %293, %294 : vector<16x32xf32>
    %296 = arith.mulf %285, %295 : vector<16x32xf32>
    %297 = arith.addf %292, %296 : vector<16x32xf32>
    %298 = math.tanh %297 : vector<16x32xf32>
    %cst_69 = arith.constant 1.000000e+00 : f32
    %299 = vector.broadcast %cst_69 : f32 to vector<16x32xf32>
    %300 = arith.subf %299, %291 : vector<16x32xf32>
    %301 = arith.mulf %300, %298 : vector<16x32xf32>
    %302 = arith.mulf %291, %276 : vector<16x32xf32>
    %303 = arith.addf %301, %302 : vector<16x32xf32>
    %c7_i32 = arith.constant 7 : i32
    %304 = vector.broadcast %c7_i32 : i32 to vector<16x1xi32>
    %305 = arith.cmpi sgt, %12, %304 : vector<16x1xi32>
    %cst_70 = arith.constant 0xFF800000 : f32
    %306 = vector.shape_cast %305 : vector<16x1xi1> to vector<16x1xi1>
    %307 = vector.broadcast %306 : vector<16x1xi1> to vector<16x32xi1>
    %308 = vector.broadcast %cst_70 : f32 to vector<16x32xf32>
    %309 = arith.select %307, %303, %308 : vector<16x32xi1>, vector<16x32xf32>
    %310 = arith.maximumf %273, %309 : vector<16x32xf32>
    %311 = tpu.iota {dimensions = array<i32: 1>} : vector<24x16xi32>
    %c0_71 = arith.constant 0 : index
    %c0_72 = arith.constant 0 : index
    %312 = vector.load %arg9[%c0_71, %c0_72] : memref<24x1xi32, #tpu.memory_space<vmem>>, vector<24x1xi32>
    %313 = vector.broadcast %312 : vector<24x1xi32> to vector<24x16xi32>
    %314 = arith.cmpi eq, %313, %311 : vector<24x16xi32>
    %315 = arith.extui %314 : vector<24x16xi1> to vector<24x16xi32>
    %316 = arith.sitofp %315 : vector<24x16xi32> to vector<24x16xf32>
    %cst_73 = arith.constant dense<0.000000e+00> : vector<24x32xf32>
    %317 = tpu.matmul %316, %310, %cst_73 {dimension_numbers = #tpu.dot_dimension_numbers<[1], [0], [0], [1], [0, 0, 1, 1], [], []>} : vector<24x16xf32>, vector<16x32xf32>, vector<24x32xf32> -> vector<24x32xf32>
    %318 = vector.extract_strided_slice %317 {offsets = [0, 0], sizes = [8, 32], strides = [1, 1]} : vector<24x32xf32> to vector<8x32xf32>
    %c0_74 = arith.constant 0 : index
    %c0_75 = arith.constant 0 : index
    %c0_76 = arith.constant 0 : index
    %319 = vector.load %arg10[%c0_74, %c0_75, %c0_76] : memref<3x32x8xf32, #tpu.memory_space<vmem>>, vector<1x32x8xf32>
    %320 = vector.shape_cast %319 : vector<1x32x8xf32> to vector<32x8xf32>
    %cst_77 = arith.constant dense<0.000000e+00> : vector<8x8xf32>
    %321 = tpu.matmul %318, %320, %cst_77 {dimension_numbers = #tpu.dot_dimension_numbers<[1], [0], [0], [1], [0, 0, 1, 1], [], []>} : vector<8x32xf32>, vector<32x8xf32>, vector<8x8xf32> -> vector<8x8xf32>
    %322 = vector.extract_strided_slice %317 {offsets = [8, 0], sizes = [8, 32], strides = [1, 1]} : vector<24x32xf32> to vector<8x32xf32>
    %c1 = arith.constant 1 : index
    %c0_78 = arith.constant 0 : index
    %c0_79 = arith.constant 0 : index
    %323 = vector.load %arg10[%c1, %c0_78, %c0_79] : memref<3x32x8xf32, #tpu.memory_space<vmem>>, vector<1x32x8xf32>
    %324 = vector.shape_cast %323 : vector<1x32x8xf32> to vector<32x8xf32>
    %cst_80 = arith.constant dense<0.000000e+00> : vector<8x8xf32>
    %325 = tpu.matmul %322, %324, %cst_80 {dimension_numbers = #tpu.dot_dimension_numbers<[1], [0], [0], [1], [0, 0, 1, 1], [], []>} : vector<8x32xf32>, vector<32x8xf32>, vector<8x8xf32> -> vector<8x8xf32>
    %326 = arith.addf %321, %325 : vector<8x8xf32>
    %327 = vector.extract_strided_slice %317 {offsets = [16, 0], sizes = [8, 32], strides = [1, 1]} : vector<24x32xf32> to vector<8x32xf32>
    %c2 = arith.constant 2 : index
    %c0_81 = arith.constant 0 : index
    %c0_82 = arith.constant 0 : index
    %328 = vector.load %arg10[%c2, %c0_81, %c0_82] : memref<3x32x8xf32, #tpu.memory_space<vmem>>, vector<1x32x8xf32>
    %329 = vector.shape_cast %328 : vector<1x32x8xf32> to vector<32x8xf32>
    %cst_83 = arith.constant dense<0.000000e+00> : vector<8x8xf32>
    %330 = tpu.matmul %327, %329, %cst_83 {dimension_numbers = #tpu.dot_dimension_numbers<[1], [0], [0], [1], [0, 0, 1, 1], [], []>} : vector<8x32xf32>, vector<32x8xf32>, vector<8x8xf32> -> vector<8x8xf32>
    %331 = arith.addf %326, %330 : vector<8x8xf32>
    %c0_84 = arith.constant 0 : index
    %c0_85 = arith.constant 0 : index
    %332 = vector.load %arg11[%c0_84, %c0_85] : memref<1x8xf32, #tpu.memory_space<vmem>>, vector<1x8xf32>
    %333 = vector.broadcast %332 : vector<1x8xf32> to vector<8x8xf32>
    %334 = arith.addf %331, %333 : vector<8x8xf32>
    %c0_86 = arith.constant 0 : index
    %c0_87 = arith.constant 0 : index
    %335 = vector.load %arg12[%c0_86, %c0_87] : memref<8x8xf32, #tpu.memory_space<vmem>>, vector<8x8xf32>
    tpu.vector_store %arg12[%c0_86, %c0_87], %334 {strides = array<i32>} : memref<8x8xf32, #tpu.memory_space<vmem>>, vector<8x8xf32>,
    return
  }
}

</mosaic_0001>

<llo_original>
// kernel: text_base_model_forward.1
$region0: #{text_base_model_forward.1}
  #allocation0 [shape = 'u32[]', space=smem, size = 0x4, offset = 0x4, fixed_abs, tag = 'smem constant byte address 0x4 - core index']
  #allocation1 [shape = 'u32[144,128]{1,0:T(1,128)}', space=vmem, size = 0x12000, scoped, tag = 'internal scratch']
  #allocation2 [shape = 'f32[128,96]{1,0:T(8,128)}', space=vmem, size = 0x10000, scoped, tag = 'scratch operand']
  %s0 = inlined_call_operand.vmem [shape: f32[8,8,32], index: 0, kind: input, shape index: {}]
  %s1 = inlined_call_operand.vmem [shape: f32[8,8,32], index: 1, kind: input, shape index: {}]
  %s2 = inlined_call_operand.vmem [shape: s32[8,1], index: 2, kind: input, shape index: {}]
  %s3 = inlined_call_operand.vmem [shape: s32[8,1], index: 3, kind: input, shape index: {}]
  %s4 = inlined_call_operand.vmem [shape: f32[8,32], index: 4, kind: input, shape index: {}]
  %s5 = inlined_call_operand.vmem [shape: f32[32,96], index: 5, kind: input, shape index: {}]
  %s6 = inlined_call_operand.vmem [shape: f32[32,96], index: 6, kind: input, shape index: {}]
  %s7 = inlined_call_operand.vmem [shape: f32[1,96], index: 7, kind: input, shape index: {}]
  %s8 = inlined_call_operand.hbm [shape: f32[1,32], index: 8, kind: input, shape index: {}]
  %s9 = inlined_call_operand.vmem [shape: s32[24,1], index: 9, kind: input, shape index: {}]
  %s10 = inlined_call_operand.vmem [shape: f32[3,32,8], index: 10, kind: input, shape index: {}]
  %s11 = inlined_call_operand.hbm [shape: f32[1,8], index: 11, kind: input, shape index: {}]
  %s12 = inlined_call_operand.hbm [shape: f32[8,8], index: 12, kind: output, shape index: {}]
  %s13 = sld [smem:[#allocation0]]
  $region66: #{text_base_model_forward.1} parent=0
    _
  %s15 = ssub.s32 1, %s13
  %s16 = scalar_select 0, %s15, %s13
  $region1: #{text_base_model_forward.1} parent=0
    #allocation3 [shape = 'u8[512]{0}', space=vmem, size = 0x400, scoped, tag = 'input window, operand 8, single buffered']
    #allocation4 [shape = 's32[1]{0}', space=sflag, size = 0x4, scoped, tag = 'scoped memory for text_base_model_forward.1']
    #allocation5 [shape = 's32[1]{0}', space=sflag, size = 0x4, scoped, tag = 'scoped memory for text_base_model_forward.1']
    #allocation6 [shape = 'u8[512]{0}', space=vmem, size = 0x400, scoped, tag = 'input window, operand 11, single buffered']
    #allocation7 [shape = 's32[1]{0}', space=sflag, size = 0x4, scoped, tag = 'scoped memory for text_base_model_forward.1']
    #allocation8 [shape = 'u8[4096]{0}', space=vmem, size = 0x1000, scoped, tag = 'output window, operand 0, single buffered']
    %17 = vsyncpa [#allocation4], 0
    %18 = vsyncpa [#allocation7], 0
    %19 = vsyncpa [#allocation5], 0
    // Predicated region
    $region2: #{text_base_model_forward.1} parent=1 // pred_check
      _
    $region3: #{text_base_model_forward.1} parent=1 // pred_check_branch
      %21 = sbr.rel (0) target = $region5
    $region4: #{text_base_model_forward.1} parent=1 // pred_region
      _
    $region5: #{text_base_model_forward.1} parent=1 // pred_fallthru
      _
    // Predicated region
    $region6: #{text_base_model_forward.1} parent=1 // pred_check
      _
    $region7: #{text_base_model_forward.1} parent=1 // pred_check_branch
      %23 = sbr.rel (0) target = $region9
    $region8: #{text_base_model_forward.1} parent=1 // pred_region
      _
    $region9: #{text_base_model_forward.1} parent=1 // pred_fallthru
      _
    // Predicated region
    $region10: #{text_base_model_forward.1} parent=1 // pred_check
      _
    $region11: #{text_base_model_forward.1} parent=1 // pred_check_branch
      %25 = sbr.rel (0) target = $region13
    $region12: #{text_base_model_forward.1} parent=1 // pred_region
      _
    $region13: #{text_base_model_forward.1} parent=1 // pred_fallthru
      _
    // Predicated region
    $region14: #{text_base_model_forward.1} parent=1 // pred_check
      _
    $region15: #{text_base_model_forward.1} parent=1 // pred_check_branch
      %27 = sbr.rel (0) target = $region17
    $region16: #{text_base_model_forward.1} parent=1 // pred_region
      _
    $region17: #{text_base_model_forward.1} parent=1 // pred_fallthru
      _
    // Predicated region
    $region18: #{text_base_model_forward.1} parent=1 // pred_check
      _
    $region19: #{text_base_model_forward.1} parent=1 // pred_check_branch
      %29 = sbr.rel (0) target = $region21
    $region20: #{text_base_model_forward.1} parent=1 // pred_region
      _
    $region21: #{text_base_model_forward.1} parent=1 // pred_fallthru
      _
    // Predicated region
    $region22: #{text_base_model_forward.1} parent=1 // pred_check
      _
    $region23: #{text_base_model_forward.1} parent=1 // pred_check_branch
      %31 = sbr.rel (0) target = $region25
    $region24: #{text_base_model_forward.1} parent=1 // pred_region
      _
    $region25: #{text_base_model_forward.1} parent=1 // pred_fallthru
      _
    // Predicated region
    $region26: #{text_base_model_forward.1} parent=1 // pred_check
      _
    $region27: #{text_base_model_forward.1} parent=1 // pred_check_branch
      %33 = sbr.rel (0) target = $region29
    $region28: #{text_base_model_forward.1} parent=1 // pred_region
      _
    $region29: #{text_base_model_forward.1} parent=1 // pred_fallthru
      _
    // Predicated region
    $region30: #{text_base_model_forward.1} parent=1 // pred_check
      _
    $region31: #{text_base_model_forward.1} parent=1 // pred_check_branch
      %35 = sbr.rel (0) target = $region33
    $region32: #{text_base_model_forward.1} parent=1 // pred_region
      _
    $region33: #{text_base_model_forward.1} parent=1 // pred_fallthru
      _
    // Predicated region
    $region34: #{text_base_model_forward.1} parent=1 // pred_check
      _
    $region35: #{text_base_model_forward.1} parent=1 // pred_check_branch
      %37 = sbr.rel (0) target = $region37
    $region36: #{text_base_model_forward.1} parent=1 // pred_region
      %s39 = ssub.s32 16, 16
      %40 = vsyncadd [#allocation4], %s39
      %s42 = sshll.u32 [#allocation3], 4
      %s43 = int_to_ptr.vmem [resolvable:$true] %s42
      %45 = dma.hbm_to_vmem [thread:$0]  %s8, 16, %s43, [#allocation4]
    $region37: #{text_base_model_forward.1} parent=1 // pred_fallthru
      _
    // Predicated region
    $region38: #{text_base_model_forward.1} parent=1 // pred_check
      _
    $region39: #{text_base_model_forward.1} parent=1 // pred_check_branch
      %47 = sbr.rel (0) target = $region41
    $region40: #{text_base_model_forward.1} parent=1 // pred_region
      _
    $region41: #{text_base_model_forward.1} parent=1 // pred_fallthru
      _
    // Predicated region
    $region42: #{text_base_model_forward.1} parent=1 // pred_check
      _
    $region43: #{text_base_model_forward.1} parent=1 // pred_check_branch
      %49 = sbr.rel (0) target = $region45
    $region44: #{text_base_model_forward.1} parent=1 // pred_region
      _
    $region45: #{text_base_model_forward.1} parent=1 // pred_fallthru
      _
    // Predicated region
    $region46: #{text_base_model_forward.1} parent=1 // pred_check
      _
    $region47: #{text_base_model_forward.1} parent=1 // pred_check_branch
      %51 = sbr.rel (0) target = $region49
    $region48: #{text_base_model_forward.1} parent=1 // pred_region
      %s53 = ssub.s32 16, 16
      %54 = vsyncadd [#allocation7], %s53
      %s56 = sshll.u32 [#allocation6], 4
      %s57 = int_to_ptr.vmem [resolvable:$true] %s56
      %59 = dma.hbm_to_vmem [thread:$0]  %s11, 16, %s57, [#allocation7]
    $region49: #{text_base_model_forward.1} parent=1 // pred_fallthru
      _
    // Predicated region
    $region50: #{text_base_model_forward.1} parent=1 // pred_check
      _
    $region51: #{text_base_model_forward.1} parent=1 // pred_check_branch
      %61 = sbr.rel (0) target = $region53
    $region52: #{text_base_model_forward.1} parent=1 // pred_region
      %62 = dma.done [#allocation4], 16
    $region53: #{text_base_model_forward.1} parent=1 // pred_fallthru
      _
    // Predicated region
    $region54: #{text_base_model_forward.1} parent=1 // pred_check
      _
    $region55: #{text_base_model_forward.1} parent=1 // pred_check_branch
      %64 = sbr.rel (0) target = $region57
    $region56: #{text_base_model_forward.1} parent=1 // pred_region
      %65 = dma.done [#allocation7], 16
    $region57: #{text_base_model_forward.1} parent=1 // pred_fallthru
      _
    %v66 = vld [vmem:[%s0] sm:$0xff]
    %v67 = vld [vmem:[%s0 + $0x8] sm:$0xff]
    %v68 = vld [vmem:[%s0 + $0x10] sm:$0xff]
    %v69 = vld [vmem:[%s0 + $0x18] sm:$0xff]
    %v70 = vld [vmem:[%s0 + $0x20] sm:$0xff]
    %v71 = vld [vmem:[%s0 + $0x28] sm:$0xff]
    %v72 = vld [vmem:[%s0 + $0x30] sm:$0xff]
    %v73 = vld [vmem:[%s0 + $0x38] sm:$0xff]
    %v74 = vld [vmem:[%s1] sm:$0xff]
    %v75 = vld [vmem:[%s1 + $0x8] sm:$0xff]
    %v76 = vld [vmem:[%s1 + $0x10] sm:$0xff]
    %v77 = vld [vmem:[%s1 + $0x18] sm:$0xff]
    %v78 = vld [vmem:[%s1 + $0x20] sm:$0xff]
    %v79 = vld [vmem:[%s1 + $0x28] sm:$0xff]
    %v80 = vld [vmem:[%s1 + $0x30] sm:$0xff]
    %v81 = vld [vmem:[%s1 + $0x38] sm:$0xff]
    %v82 = vld [vmem:[%s5] sm:$0xff]
    %v83 = vld [vmem:[%s5 + $0x8] sm:$0xff]
    %v84 = vld [vmem:[%s5 + $0x10] sm:$0xff]
    %v85 = vld [vmem:[%s5 + $0x18] sm:$0xff]
    %v86 = vld [vmem:[%s7] sm:$0x1]
    %v88 = vlaneseq
    %v89 = vshrl.u32 %v88, 7
    %v90 = vsub.s32 0, %v89
    %v91 = vrot.slane %v86, %v90
    %vm93 = vcmask 261120
    %v95 = vsel %vm93, %v66, 0
    %v98 = vsel %vm93, %v74, 0
    %v101 = vsel %vm93, %v67, 0
    %v104 = vsel %vm93, %v75, 0
    %v107 = vsel %vm93, %v68, 0
    %v110 = vsel %vm93, %v76, 0
    %v113 = vsel %vm93, %v69, 0
    %v116 = vsel %vm93, %v77, 0
    %v119 = vsel %vm93, %v70, 0
    %v122 = vsel %vm93, %v78, 0
    %v125 = vsel %vm93, %v71, 0
    %v128 = vsel %vm93, %v79, 0
    %v131 = vsel %vm93, %v72, 0
    %v134 = vsel %vm93, %v80, 0
    %v137 = vsel %vm93, %v73, 0
    %v140 = vsel %vm93, %v81, 0
    %142 = vmatprep.subr.mxu0 0.0
    %143 = vmatpush1.msra.mxu0 %v82
    %144 = vmatprep.subr.mxu0 0.0
    %145 = vmatpush1.msra.mxu0 %v83
    %146 = vmatprep.subr.mxu0 0.0
    %147 = vmatpush1.msra.mxu0 %v84
    %148 = vmatprep.subr.mxu0 0.0
    %149 = vmatpush1.msra.mxu0 %v85
    %150 = vmatprep.subr.mxu0 0.0
    %151 = vmatpush1.msra.mxu0 0.0
    %152 = vmatprep.subr.mxu0 0.0
    %153 = vmatpush1.msra.mxu0 0.0
    %154 = vmatprep.subr.mxu0 0.0
    %155 = vmatpush1.msra.mxu0 0.0
    %156 = vmatprep.subr.mxu0 0.0
    %157 = vmatpush1.msra.mxu0 0.0
    %158 = vmatprep.subr.mxu0 0.0
    %159 = vmatpush1.msra.mxu0 0.0
    %160 = vmatprep.subr.mxu0 0.0
    %161 = vmatpush1.msra.mxu0 0.0
    %162 = vmatprep.subr.mxu0 0.0
    %163 = vmatpush1.msra.mxu0 0.0
    %164 = vmatprep.subr.mxu0 0.0
    %165 = vmatpush1.msra.mxu0 0.0
    %166 = vmatprep.subr.mxu0 0.0
    %167 = vmatpush1.msra.mxu0 0.0
    %168 = vmatprep.subr.mxu0 0.0
    %169 = vmatpush1.msra.mxu0 0.0
    %170 = vmatprep.subr.mxu0 0.0
    %171 = vmatpush1.msra.mxu0 0.0
    %172 = vmatprep.subr.mxu0 0.0
    %173 = vmatpush1.msra.mxu0 0.0
    %174 = vmatprep.subr.mxu0 0.0
    %175 = vmatpush1.msra.mxu0 0.0
    %176 = vmatprep.subr.mxu0 0.0
    %177 = vmatpush1.msra.mxu0 0.0
    %178 = vmatprep.subr.mxu0 0.0
    %179 = vmatpush1.msra.mxu0 0.0
    %180 = vmatprep.subr.mxu0 0.0
    %181 = vmatpush1.msra.mxu0 0.0
    %182 = vmatprep.subr.mxu0 0.0
    %183 = vmatpush1.msra.mxu0 0.0
    %184 = vmatprep.subr.mxu0 0.0
    %185 = vmatpush1.msra.mxu0 0.0
    %186 = vmatprep.subr.mxu0 0.0
    %187 = vmatpush1.msra.mxu0 0.0
    %188 = vmatprep.subr.mxu0 0.0
    %189 = vmatpush1.msra.mxu0 0.0
    %190 = vmatprep.subr.mxu0 0.0
    %191 = vmatpush1.msra.mxu0 0.0
    %192 = vmatprep.subr.mxu0 0.0
    %193 = vmatpush1.msra.mxu0 0.0
    %194 = vmatprep.subr.mxu0 0.0
    %195 = vmatpush1.msra.mxu0 0.0
    %196 = vmatprep.subr.mxu0 0.0
    %197 = vmatpush1.msra.mxu0 0.0
    %198 = vmatprep.subr.mxu0 0.0
    %199 = vmatpush1.msra.mxu0 0.0
    %200 = vmatprep.subr.mxu0 0.0
    %201 = vmatpush1.msra.mxu0 0.0
    %202 = vmatprep.subr.mxu0 0.0
    %203 = vmatpush1.msra.mxu0 0.0
    %204 = vmatprep.subr.mxu0 0.0
    %205 = vmatpush1.msra.mxu0 0.0
    %206 = vmatprep.mubr.f32.mxu0 0.0
    %207 = vmatmul.mubr.f32.gmra.mrb[0].mxu0 %v95
    %v208 = vpop.f32.mrb[0].mxu0
    %v209 = vadd.f32 %v91, %v208
    %v210 = vpop.f32.mrb[0].mxu0
    %211 = vmatprep.mubr.f32.mxu0 0.0
    %212 = vmatmul.mubr.f32.gmra.mrb[0].mxu0 %v98
    %v213 = vpop.f32.mrb[0].mxu0
    %v214 = vadd.f32 %v91, %v213
    %v215 = vpop.f32.mrb[0].mxu0
    %216 = vmatprep.mubr.f32.mxu0 0.0
    %217 = vmatmul.mubr.f32.gmra.mrb[0].mxu0 %v101
    %v218 = vpop.f32.mrb[0].mxu0
    %v219 = vadd.f32 %v91, %v218
    %v220 = vpop.f32.mrb[0].mxu0
    %221 = vmatprep.mubr.f32.mxu0 0.0
    %222 = vmatmul.mubr.f32.gmra.mrb[0].mxu0 %v104
    %v223 = vpop.f32.mrb[0].mxu0
    %v224 = vadd.f32 %v91, %v223
    %v225 = vpop.f32.mrb[0].mxu0
    %226 = vmatprep.mubr.f32.mxu0 0.0
    %227 = vmatmul.mubr.f32.gmra.mrb[0].mxu0 %v107
    %v228 = vpop.f32.mrb[0].mxu0
    %v229 = vadd.f32 %v91, %v228
    %v230 = vpop.f32.mrb[0].mxu0
    %231 = vmatprep.mubr.f32.mxu0 0.0
    %232 = vmatmul.mubr.f32.gmra.mrb[0].mxu0 %v110
    %v233 = vpop.f32.mrb[0].mxu0
    %v234 = vadd.f32 %v91, %v233
    %v235 = vpop.f32.mrb[0].mxu0
    %236 = vmatprep.mubr.f32.mxu0 0.0
    %237 = vmatmul.mubr.f32.gmra.mrb[0].mxu0 %v113
    %v238 = vpop.f32.mrb[0].mxu0
    %v239 = vadd.f32 %v91, %v238
    %v240 = vpop.f32.mrb[0].mxu0
    %241 = vmatprep.mubr.f32.mxu0 0.0
    %242 = vmatmul.mubr.f32.gmra.mrb[0].mxu0 %v116
    %v243 = vpop.f32.mrb[0].mxu0
    %v244 = vadd.f32 %v91, %v243
    %v245 = vpop.f32.mrb[0].mxu0
    %246 = vmatprep.mubr.f32.mxu0 0.0
    %247 = vmatmul.mubr.f32.gmra.mrb[0].mxu0 %v119
    %v248 = vpop.f32.mrb[0].mxu0
    %v249 = vadd.f32 %v91, %v248
    %v250 = vpop.f32.mrb[0].mxu0
    %251 = vmatprep.mubr.f32.mxu0 0.0
    %252 = vmatmul.mubr.f32.gmra.mrb[0].mxu0 %v122
    %v253 = vpop.f32.mrb[0].mxu0
    %v254 = vadd.f32 %v91, %v253
    %v255 = vpop.f32.mrb[0].mxu0
    %256 = vmatprep.mubr.f32.mxu0 0.0
    %257 = vmatmul.mubr.f32.gmra.mrb[0].mxu0 %v125
    %v258 = vpop.f32.mrb[0].mxu0
    %v259 = vadd.f32 %v91, %v258
    %v260 = vpop.f32.mrb[0].mxu0
    %261 = vmatprep.mubr.f32.mxu0 0.0
    %262 = vmatmul.mubr.f32.gmra.mrb[0].mxu0 %v128
    %v263 = vpop.f32.mrb[0].mxu0
    %v264 = vadd.f32 %v91, %v263
    %v265 = vpop.f32.mrb[0].mxu0
    %266 = vmatprep.mubr.f32.mxu0 0.0
    %267 = vmatmul.mubr.f32.gmra.mrb[0].mxu0 %v131
    %v268 = vpop.f32.mrb[0].mxu0
    %v269 = vadd.f32 %v91, %v268
    %v270 = vpop.f32.mrb[0].mxu0
    %271 = vmatprep.mubr.f32.mxu0 0.0
    %272 = vmatmul.mubr.f32.gmra.mrb[0].mxu0 %v134
    %v273 = vpop.f32.mrb[0].mxu0
    %v274 = vadd.f32 %v91, %v273
    %v275 = vpop.f32.mrb[0].mxu0
    %276 = vmatprep.mubr.f32.mxu0 0.0
    %277 = vmatmul.mubr.f32.gmra.mrb[0].mxu0 %v137
    %v278 = vpop.f32.mrb[0].mxu0
    %v279 = vadd.f32 %v91, %v278
    %v280 = vpop.f32.mrb[0].mxu0
    %281 = vmatprep.mubr.f32.mxu0 0.0
    %282 = vmatmul.mubr.f32.gmra.mrb[0].mxu0 %v140
    %v283 = vpop.f32.mrb[0].mxu0
    %v284 = vadd.f32 %v91, %v283
    %v285 = vpop.f32.mrb[0].mxu0
    %286 = vdwg.mxu0
    %vm287 = vcmask 785408
    %288 = vst.msk [vmem:[#allocation2] sm:$0xff] %vm287, %v209
    %289 = vst.msk [vmem:[#allocation2 + $0x8] sm:$0xff] %vm287, %v214
    %290 = vst.msk [vmem:[#allocation2 + $0x10] sm:$0xff] %vm287, %v219
    %291 = vst.msk [vmem:[#allocation2 + $0x18] sm:$0xff] %vm287, %v224
    %292 = vst.msk [vmem:[#allocation2 + $0x20] sm:$0xff] %vm287, %v229
    %293 = vst.msk [vmem:[#allocation2 + $0x28] sm:$0xff] %vm287, %v234
    %294 = vst.msk [vmem:[#allocation2 + $0x30] sm:$0xff] %vm287, %v239
    %295 = vst.msk [vmem:[#allocation2 + $0x38] sm:$0xff] %vm287, %v244
    %296 = vst.msk [vmem:[#allocation2 + $0x40] sm:$0xff] %vm287, %v249
    %297 = vst.msk [vmem:[#allocation2 + $0x48] sm:$0xff] %vm287, %v254
    %298 = vst.msk [vmem:[#allocation2 + $0x50] sm:$0xff] %vm287, %v259
    %299 = vst.msk [vmem:[#allocation2 + $0x58] sm:$0xff] %vm287, %v264
    %300 = vst.msk [vmem:[#allocation2 + $0x60] sm:$0xff] %vm287, %v269
    %301 = vst.msk [vmem:[#allocation2 + $0x68] sm:$0xff] %vm287, %v274
    %302 = vst.msk [vmem:[#allocation2 + $0x70] sm:$0xff] %vm287, %v279
    %303 = vst.msk [vmem:[#allocation2 + $0x78] sm:$0xff] %vm287, %v284
    %v304 = vld [vmem:[%s2] sm:$0xff]
    %v305 = vld [vmem:[%s3] sm:$0xff]
    %v306 = vld [vmem:[%s6] sm:$0xff]
    %v307 = vld [vmem:[%s6 + $0x8] sm:$0xff]
    %v308 = vld [vmem:[%s6 + $0x10] sm:$0xff]
    %v309 = vld [vmem:[%s6 + $0x18] sm:$0xff]
    %v310 = vld [vmem:[#allocation3] sm:$0x1]
    %v311 = vld [vmem:[%s4] sm:$0xff]
    %v312 = vld [vmem:[#allocation2] sm:$0xff]
    %v313 = vld [vmem:[#allocation2 + $0x8] sm:$0xff]
    %v315 = vsel %vm93, %v311, 0
    %317 = vmatprep.subr.mxu0 0.0
    %318 = vmatpush1.msra.mxu0 %v306
    %319 = vmatprep.subr.mxu0 0.0
    %320 = vmatpush1.msra.mxu0 %v307
    %321 = vmatprep.subr.mxu0 0.0
    %322 = vmatpush1.msra.mxu0 %v308
    %323 = vmatprep.subr.mxu0 0.0
    %324 = vmatpush1.msra.mxu0 %v309
    %325 = vmatprep.subr.mxu0 0.0
    %326 = vmatpush1.msra.mxu0 0.0
    %327 = vmatprep.subr.mxu0 0.0
    %328 = vmatpush1.msra.mxu0 0.0
    %329 = vmatprep.subr.mxu0 0.0
    %330 = vmatpush1.msra.mxu0 0.0
    %331 = vmatprep.subr.mxu0 0.0
    %332 = vmatpush1.msra.mxu0 0.0
    %333 = vmatprep.subr.mxu0 0.0
    %334 = vmatpush1.msra.mxu0 0.0
    %335 = vmatprep.subr.mxu0 0.0
    %336 = vmatpush1.msra.mxu0 0.0
    %337 = vmatprep.subr.mxu0 0.0
    %338 = vmatpush1.msra.mxu0 0.0
    %339 = vmatprep.subr.mxu0 0.0
    %340 = vmatpush1.msra.mxu0 0.0
    %341 = vmatprep.subr.mxu0 0.0
    %342 = vmatpush1.msra.mxu0 0.0
    %343 = vmatprep.subr.mxu0 0.0
    %344 = vmatpush1.msra.mxu0 0.0
    %345 = vmatprep.subr.mxu0 0.0
    %346 = vmatpush1.msra.mxu0 0.0
    %347 = vmatprep.subr.mxu0 0.0
    %348 = vmatpush1.msra.mxu0 0.0
    %349 = vmatprep.subr.mxu0 0.0
    %350 = vmatpush1.msra.mxu0 0.0
    %351 = vmatprep.subr.mxu0 0.0
    %352 = vmatpush1.msra.mxu0 0.0
    %353 = vmatprep.subr.mxu0 0.0
    %354 = vmatpush1.msra.mxu0 0.0
    %355 = vmatprep.subr.mxu0 0.0
    %356 = vmatpush1.msra.mxu0 0.0
    %357 = vmatprep.subr.mxu0 0.0
    %358 = vmatpush1.msra.mxu0 0.0
    %359 = vmatprep.subr.mxu0 0.0
    %360 = vmatpush1.msra.mxu0 0.0
    %361 = vmatprep.subr.mxu0 0.0
    %362 = vmatpush1.msra.mxu0 0.0
    %363 = vmatprep.subr.mxu0 0.0
    %364 = vmatpush1.msra.mxu0 0.0
    %365 = vmatprep.subr.mxu0 0.0
    %366 = vmatpush1.msra.mxu0 0.0
    %367 = vmatprep.subr.mxu0 0.0
    %368 = vmatpush1.msra.mxu0 0.0
    %369 = vmatprep.subr.mxu0 0.0
    %370 = vmatpush1.msra.mxu0 0.0
    %371 = vmatprep.subr.mxu0 0.0
    %372 = vmatpush1.msra.mxu0 0.0
    %373 = vmatprep.subr.mxu0 0.0
    %374 = vmatpush1.msra.mxu0 0.0
    %375 = vmatprep.subr.mxu0 0.0
    %376 = vmatpush1.msra.mxu0 0.0
    %377 = vmatprep.subr.mxu0 0.0
    %378 = vmatpush1.msra.mxu0 0.0
    %379 = vmatprep.subr.mxu0 0.0
    %380 = vmatpush1.msra.mxu0 0.0
    %381 = vmatprep.mubr.f32.mxu0 0.0
    %382 = vmatmul.mubr.f32.gmra.mrb[0].mxu0 %v315
    %v383 = vpop.f32.mrb[0].mxu0
    %v384 = vadd.f32 0.0, %v383
    %v385 = vpop.f32.mrb[0].mxu0
    %386 = vmatprep.mubr.f32.mxu0 0.0
    %387 = vmatmul.mubr.f32.gmra.mrb[0].mxu0 %v315
    %v388 = vpop.f32.mrb[0].mxu0
    %v389 = vadd.f32 0.0, %v388
    %v390 = vpop.f32.mrb[0].mxu0
    %391 = vdwg.mxu0
    %v392 = vadd.f32 %v312, %v384
    %v393 = vadd.f32 %v313, %v389
    %v394 = vxor.u32 %v392, 2147483648
    %v395 = vxor.u32 %v393, 2147483648
    %v396 = vmul.f32 %v394, 1.442695
    %v397 = vpow.pop %v396
    %v398 = vmul.f32 %v395, 1.442695
    %v399 = vpow.pop %v398
    %v400 = vadd.f32 %v397, 1.0
    %v401 = vadd.f32 %v399, 1.0
    %v402 = vrcp.pop %v400
    %v403 = vmul.f32 1.0, %v402
    %v404 = vrcp.pop %v401
    %v405 = vmul.f32 1.0, %v404
    %v407 = vlaneseq
    %v408 = vshrl.u32 %v407, 7
    %v409 = vsub.s32 0, %v408
    %v410 = vrot.slane %v310, %v409
    %411 = vrot.lane.b32.xlu0 %v410, 64
    %v412 = vpop.permute.xlu0 %411
    %v414 = vadd.f32 %v384, %v412
    %v415 = vadd.f32 %v389, %v412
    %418 = vrot.lane.b32.xlu0 %v414, 64
    %v419 = vpop.permute.xlu0 %418
    %420 = vrot.lane.b32.xlu0 %v415, 64
    %v421 = vpop.permute.xlu0 %420
    %v424 = vmul.f32 %v403, %v419
    %v425 = vmul.f32 %v405, %v421
    %428 = vrot.lane.b32.xlu0 %v424, 64
    %v429 = vpop.permute.xlu0 %428
    %430 = vrot.lane.b32.xlu0 %v425, 64
    %v431 = vpop.permute.xlu0 %430
    %v434 = vadd.f32 %v312, %v429
    %v435 = vadd.f32 %v313, %v431
    %v436 = vtanh.pop %v434
    %v437 = vtanh.pop %v435
    %v438 = vsub.f32 1.0, %v403
    %v439 = vsub.f32 1.0, %v405
    %442 = vrot.lane.b32.xlu0 %v436, 96
    %v443 = vpop.permute.xlu0 %442
    %444 = vrot.lane.b32.xlu0 %v437, 96
    %v445 = vpop.permute.xlu0 %444
    %v448 = vmul.f32 %v438, %v443
    %v449 = vmul.f32 %v439, %v445
    %450 = vrot.lane.b32.xlu0 %v311, 32
    %v451 = vpop.permute.xlu0 %450
    %v453 = vmul.f32 %v403, %v451
    %v454 = vmul.f32 %v405, %v451
    %v455 = vadd.f32 %v448, %v453
    %v456 = vadd.f32 %v449, %v454
    %vm457 = vcmp.gt.s32.totalorder %v304, 0
    %vm458 = vcmp.gt.s32.totalorder %v305, 0
    %v459 = vsel %vm457, 1, 0
    %v460 = vsel %vm458, 1, 0
    %461 = vset.pattern.permute.xlu0 0
    %462 = vperm.xlu0 %461, %v459
    %v463 = vpop.permute.xlu0 %462
    %464 = vset.pattern.permute.xlu0 0
    %465 = vperm.xlu0 %464, %v460
    %v466 = vpop.permute.xlu0 %465
    %vm467 = vcmp.eq.s32.totalorder %v463, 1
    %vm468 = vcmp.eq.s32.totalorder %v466, 1
    %v469 = vsel %vm467, %v455, -inf
    %v470 = vsel %vm468, %v456, -inf
    %v471 = vsel %vm467, %v455, %v451
    %v472 = vsel %vm468, %v456, %v451
    %v473 = vld [vmem:[#allocation2 + $0x10] sm:$0xff]
    %v474 = vld [vmem:[#allocation2 + $0x18] sm:$0xff]
    %477 = vrot.lane.b32.xlu0 %v471, 96
    %v478 = vpop.permute.xlu0 %477
    %479 = vrot.lane.b32.xlu0 %v472, 96
    %v480 = vpop.permute.xlu0 %479
    %v481 = vsel %vm93, %v478, 0
    %v483 = vsel %vm93, %v480, 0
    %485 = vmatprep.subr.mxu0 0.0
    %486 = vmatpush1.msra.mxu0 %v306
    %487 = vmatprep.subr.mxu0 0.0
    %488 = vmatpush1.msra.mxu0 %v307
    %489 = vmatprep.subr.mxu0 0.0
    %490 = vmatpush1.msra.mxu0 %v308
    %491 = vmatprep.subr.mxu0 0.0
    %492 = vmatpush1.msra.mxu0 %v309
    %493 = vmatprep.subr.mxu0 0.0
    %494 = vmatpush1.msra.mxu0 0.0
    %495 = vmatprep.subr.mxu0 0.0
    %496 = vmatpush1.msra.mxu0 0.0
    %497 = vmatprep.subr.mxu0 0.0
    %498 = vmatpush1.msra.mxu0 0.0
    %499 = vmatprep.subr.mxu0 0.0
    %500 = vmatpush1.msra.mxu0 0.0
    %501 = vmatprep.subr.mxu0 0.0
    %502 = vmatpush1.msra.mxu0 0.0
    %503 = vmatprep.subr.mxu0 0.0
    %504 = vmatpush1.msra.mxu0 0.0
    %505 = vmatprep.subr.mxu0 0.0
    %506 = vmatpush1.msra.mxu0 0.0
    %507 = vmatprep.subr.mxu0 0.0
    %508 = vmatpush1.msra.mxu0 0.0
    %509 = vmatprep.subr.mxu0 0.0
    %510 = vmatpush1.msra.mxu0 0.0
    %511 = vmatprep.subr.mxu0 0.0
    %512 = vmatpush1.msra.mxu0 0.0
    %513 = vmatprep.subr.mxu0 0.0
    %514 = vmatpush1.msra.mxu0 0.0
    %515 = vmatprep.subr.mxu0 0.0
    %516 = vmatpush1.msra.mxu0 0.0
    %517 = vmatprep.subr.mxu0 0.0
    %518 = vmatpush1.msra.mxu0 0.0
    %519 = vmatprep.subr.mxu0 0.0
    %520 = vmatpush1.msra.mxu0 0.0
    %521 = vmatprep.subr.mxu0 0.0
    %522 = vmatpush1.msra.mxu0 0.0
    %523 = vmatprep.subr.mxu0 0.0
    %524 = vmatpush1.msra.mxu0 0.0
    %525 = vmatprep.subr.mxu0 0.0
    %526 = vmatpush1.msra.mxu0 0.0
    %527 = vmatprep.subr.mxu0 0.0
    %528 = vmatpush1.msra.mxu0 0.0
    %529 = vmatprep.subr.mxu0 0.0
    %530 = vmatpush1.msra.mxu0 0.0
    %531 = vmatprep.subr.mxu0 0.0
    %532 = vmatpush1.msra.mxu0 0.0
    %533 = vmatprep.subr.mxu0 0.0
    %534 = vmatpush1.msra.mxu0 0.0
    %535 = vmatprep.subr.mxu0 0.0
    %536 = vmatpush1.msra.mxu0 0.0
    %537 = vmatprep.subr.mxu0 0.0
    %538 = vmatpush1.msra.mxu0 0.0
    %539 = vmatprep.subr.mxu0 0.0
    %540 = vmatpush1.msra.mxu0 0.0
    %541 = vmatprep.subr.mxu0 0.0
    %542 = vmatpush1.msra.mxu0 0.0
    %543 = vmatprep.subr.mxu0 0.0
    %544 = vmatpush1.msra.mxu0 0.0
    %545 = vmatprep.subr.mxu0 0.0
    %546 = vmatpush1.msra.mxu0 0.0
    %547 = vmatprep.subr.mxu0 0.0
    %548 = vmatpush1.msra.mxu0 0.0
    %549 = vmatprep.mubr.f32.mxu0 0.0
    %550 = vmatmul.mubr.f32.gmra.mrb[0].mxu0 %v481
    %v551 = vpop.f32.mrb[0].mxu0
    %v552 = vadd.f32 0.0, %v551
    %v553 = vpop.f32.mrb[0].mxu0
    %554 = vmatprep.mubr.f32.mxu0 0.0
    %555 = vmatmul.mubr.f32.gmra.mrb[0].mxu0 %v483
    %v556 = vpop.f32.mrb[0].mxu0
    %v557 = vadd.f32 0.0, %v556
    %v558 = vpop.f32.mrb[0].mxu0
    %559 = vdwg.mxu0
    %v560 = vadd.f32 %v473, %v552
    %v561 = vadd.f32 %v474, %v557
    %v562 = vxor.u32 %v560, 2147483648
    %v563 = vxor.u32 %v561, 2147483648
    %v564 = vmul.f32 %v562, 1.442695
    %v565 = vpow.pop %v564
    %v566 = vmul.f32 %v563, 1.442695
    %v567 = vpow.pop %v566
    %v568 = vadd.f32 %v565, 1.0
    %v569 = vadd.f32 %v567, 1.0
    %v570 = vrcp.pop %v568
    %v571 = vmul.f32 1.0, %v570
    %v572 = vrcp.pop %v569
    %v573 = vmul.f32 1.0, %v572
    %v574 = vadd.f32 %v552, %v412
    %v575 = vadd.f32 %v557, %v412
    %578 = vrot.lane.b32.xlu0 %v574, 64
    %v579 = vpop.permute.xlu0 %578
    %580 = vrot.lane.b32.xlu0 %v575, 64
    %v581 = vpop.permute.xlu0 %580
    %v584 = vmul.f32 %v571, %v579
    %v585 = vmul.f32 %v573, %v581
    %588 = vrot.lane.b32.xlu0 %v584, 64
    %v589 = vpop.permute.xlu0 %588
    %590 = vrot.lane.b32.xlu0 %v585, 64
    %v591 = vpop.permute.xlu0 %590
    %v594 = vadd.f32 %v473, %v589
    %v595 = vadd.f32 %v474, %v591
    %v596 = vtanh.pop %v594
    %v597 = vtanh.pop %v595
    %v598 = vsub.f32 1.0, %v571
    %v599 = vsub.f32 1.0, %v573
    %602 = vrot.lane.b32.xlu0 %v596, 96
    %v603 = vpop.permute.xlu0 %602
    %604 = vrot.lane.b32.xlu0 %v597, 96
    %v605 = vpop.permute.xlu0 %604
    %v608 = vmul.f32 %v598, %v603
    %v609 = vmul.f32 %v599, %v605
    %v610 = vmul.f32 %v571, %v471
    %v611 = vmul.f32 %v573, %v472
    %v612 = vadd.f32 %v608, %v610
    %v613 = vadd.f32 %v609, %v611
    %vm614 = vcmp.gt.s32.totalorder %v304, 1
    %vm615 = vcmp.gt.s32.totalorder %v305, 1
    %v616 = vsel %vm614, 1, 0
    %v617 = vsel %vm615, 1, 0
    %618 = vset.pattern.permute.xlu0 0
    %619 = vperm.xlu0 %618, %v616
    %v620 = vpop.permute.xlu0 %619
    %621 = vset.pattern.permute.xlu0 0
    %622 = vperm.xlu0 %621, %v617
    %v623 = vpop.permute.xlu0 %622
    %vm624 = vcmp.eq.s32.totalorder %v620, 1
    %vm625 = vcmp.eq.s32.totalorder %v623, 1
    %v626 = vsel %vm624, %v612, -inf
    %v627 = vsel %vm625, %v613, -inf
    %v628 = vmax.f32 %v469, %v626
    %v629 = vmax.f32 %v470, %v627
    %v630 = vsel %vm624, %v612, %v471
    %v631 = vsel %vm625, %v613, %v472
    %v632 = vld [vmem:[#allocation2 + $0x20] sm:$0xff]
    %v633 = vld [vmem:[#allocation2 + $0x28] sm:$0xff]
    %636 = vrot.lane.b32.xlu0 %v630, 96
    %v637 = vpop.permute.xlu0 %636
    %638 = vrot.lane.b32.xlu0 %v631, 96
    %v639 = vpop.permute.xlu0 %638
    %v640 = vsel %vm93, %v637, 0
    %v642 = vsel %vm93, %v639, 0
    %644 = vmatprep.subr.mxu0 0.0
    %645 = vmatpush1.msra.mxu0 %v306
    %646 = vmatprep.subr.mxu0 0.0
    %647 = vmatpush1.msra.mxu0 %v307
    %648 = vmatprep.subr.mxu0 0.0
    %649 = vmatpush1.msra.mxu0 %v308
    %650 = vmatprep.subr.mxu0 0.0
    %651 = vmatpush1.msra.mxu0 %v309
    %652 = vmatprep.subr.mxu0 0.0
    %653 = vmatpush1.msra.mxu0 0.0
    %654 = vmatprep.subr.mxu0 0.0
    %655 = vmatpush1.msra.mxu0 0.0
    %656 = vmatprep.subr.mxu0 0.0
    %657 = vmatpush1.msra.mxu0 0.0
    %658 = vmatprep.subr.mxu0 0.0
    %659 = vmatpush1.msra.mxu0 0.0
    %660 = vmatprep.subr.mxu0 0.0
    %661 = vmatpush1.msra.mxu0 0.0
    %662 = vmatprep.subr.mxu0 0.0
    %663 = vmatpush1.msra.mxu0 0.0
    %664 = vmatprep.subr.mxu0 0.0
    %665 = vmatpush1.msra.mxu0 0.0
    %666 = vmatprep.subr.mxu0 0.0
    %667 = vmatpush1.msra.mxu0 0.0
    %668 = vmatprep.subr.mxu0 0.0
    %669 = vmatpush1.msra.mxu0 0.0
    %670 = vmatprep.subr.mxu0 0.0
    %671 = vmatpush1.msra.mxu0 0.0
    %672 = vmatprep.subr.mxu0 0.0
    %673 = vmatpush1.msra.mxu0 0.0
    %674 = vmatprep.subr.mxu0 0.0
    %675 = vmatpush1.msra.mxu0 0.0
    %676 = vmatprep.subr.mxu0 0.0
    %677 = vmatpush1.msra.mxu0 0.0
    %678 = vmatprep.subr.mxu0 0.0
    %679 = vmatpush1.msra.mxu0 0.0
    %680 = vmatprep.subr.mxu0 0.0
    %681 = vmatpush1.msra.mxu0 0.0
    %682 = vmatprep.subr.mxu0 0.0
    %683 = vmatpush1.msra.mxu0 0.0
    %684 = vmatprep.subr.mxu0 0.0
    %685 = vmatpush1.msra.mxu0 0.0
    %686 = vmatprep.subr.mxu0 0.0
    %687 = vmatpush1.msra.mxu0 0.0
    %688 = vmatprep.subr.mxu0 0.0
    %689 = vmatpush1.msra.mxu0 0.0
    %690 = vmatprep.subr.mxu0 0.0
    %691 = vmatpush1.msra.mxu0 0.0
    %692 = vmatprep.subr.mxu0 0.0
    %693 = vmatpush1.msra.mxu0 0.0
    %694 = vmatprep.subr.mxu0 0.0
    %695 = vmatpush1.msra.mxu0 0.0
    %696 = vmatprep.subr.mxu0 0.0
    %697 = vmatpush1.msra.mxu0 0.0
    %698 = vmatprep.subr.mxu0 0.0
    %699 = vmatpush1.msra.mxu0 0.0
    %700 = vmatprep.subr.mxu0 0.0
    %701 = vmatpush1.msra.mxu0 0.0
    %702 = vmatprep.subr.mxu0 0.0
    %703 = vmatpush1.msra.mxu0 0.0
    %704 = vmatprep.subr.mxu0 0.0
    %705 = vmatpush1.msra.mxu0 0.0
    %706 = vmatprep.subr.mxu0 0.0
    %707 = vmatpush1.msra.mxu0 0.0
    %708 = vmatprep.mubr.f32.mxu0 0.0
    %709 = vmatmul.mubr.f32.gmra.mrb[0].mxu0 %v640
    %v710 = vpop.f32.mrb[0].mxu0
    %v711 = vadd.f32 0.0, %v710
    %v712 = vpop.f32.mrb[0].mxu0
    %713 = vmatprep.mubr.f32.mxu0 0.0
    %714 = vmatmul.mubr.f32.gmra.mrb[0].mxu0 %v642
    %v715 = vpop.f32.mrb[0].mxu0
    %v716 = vadd.f32 0.0, %v715
    %v717 = vpop.f32.mrb[0].mxu0
    %718 = vdwg.mxu0
    %v719 = vadd.f32 %v632, %v711
    %v720 = vadd.f32 %v633, %v716
    %v721 = vxor.u32 %v719, 2147483648
    %v722 = vxor.u32 %v720, 2147483648
    %v723 = vmul.f32 %v721, 1.442695
    %v724 = vpow.pop %v723
    %v725 = vmul.f32 %v722, 1.442695
    %v726 = vpow.pop %v725
    %v727 = vadd.f32 %v724, 1.0
    %v728 = vadd.f32 %v726, 1.0
    %v729 = vrcp.pop %v727
    %v730 = vmul.f32 1.0, %v729
    %v731 = vrcp.pop %v728
    %v732 = vmul.f32 1.0, %v731
    %v733 = vadd.f32 %v711, %v412
    %v734 = vadd.f32 %v716, %v412
    %737 = vrot.lane.b32.xlu0 %v733, 64
    %v738 = vpop.permute.xlu0 %737
    %739 = vrot.lane.b32.xlu0 %v734, 64
    %v740 = vpop.permute.xlu0 %739
    %v743 = vmul.f32 %v730, %v738
    %v744 = vmul.f32 %v732, %v740
    %747 = vrot.lane.b32.xlu0 %v743, 64
    %v748 = vpop.permute.xlu0 %747
    %749 = vrot.lane.b32.xlu0 %v744, 64
    %v750 = vpop.permute.xlu0 %749
    %v753 = vadd.f32 %v632, %v748
    %v754 = vadd.f32 %v633, %v750
    %v755 = vtanh.pop %v753
    %v756 = vtanh.pop %v754
    %v757 = vsub.f32 1.0, %v730
    %v758 = vsub.f32 1.0, %v732
    %761 = vrot.lane.b32.xlu0 %v755, 96
    %v762 = vpop.permute.xlu0 %761
    %763 = vrot.lane.b32.xlu0 %v756, 96
    %v764 = vpop.permute.xlu0 %763
    %v767 = vmul.f32 %v757, %v762
    %v768 = vmul.f32 %v758, %v764
    %v769 = vmul.f32 %v730, %v630
    %v770 = vmul.f32 %v732, %v631
    %v771 = vadd.f32 %v767, %v769
    %v772 = vadd.f32 %v768, %v770
    %vm773 = vcmp.gt.s32.totalorder %v304, 2
    %vm774 = vcmp.gt.s32.totalorder %v305, 2
    %v775 = vsel %vm773, 1, 0
    %v776 = vsel %vm774, 1, 0
    %777 = vset.pattern.permute.xlu0 0
    %778 = vperm.xlu0 %777, %v775
    %v779 = vpop.permute.xlu0 %778
    %780 = vset.pattern.permute.xlu0 0
    %781 = vperm.xlu0 %780, %v776
    %v782 = vpop.permute.xlu0 %781
    %vm783 = vcmp.eq.s32.totalorder %v779, 1
    %vm784 = vcmp.eq.s32.totalorder %v782, 1
    %v785 = vsel %vm783, %v771, -inf
    %v786 = vsel %vm784, %v772, -inf
    %v787 = vmax.f32 %v628, %v785
    %v788 = vmax.f32 %v629, %v786
    %v789 = vsel %vm783, %v771, %v630
    %v790 = vsel %vm784, %v772, %v631
    %v791 = vld [vmem:[#allocation2 + $0x30] sm:$0xff]
    %v792 = vld [vmem:[#allocation2 + $0x38] sm:$0xff]
    %795 = vrot.lane.b32.xlu0 %v789, 96
    %v796 = vpop.permute.xlu0 %795
    %797 = vrot.lane.b32.xlu0 %v790, 96
    %v798 = vpop.permute.xlu0 %797
    %v799 = vsel %vm93, %v796, 0
    %v801 = vsel %vm93, %v798, 0
    %803 = vmatprep.subr.mxu0 0.0
    %804 = vmatpush1.msra.mxu0 %v306
    %805 = vmatprep.subr.mxu0 0.0
    %806 = vmatpush1.msra.mxu0 %v307
    %807 = vmatprep.subr.mxu0 0.0
    %808 = vmatpush1.msra.mxu0 %v308
    %809 = vmatprep.subr.mxu0 0.0
    %810 = vmatpush1.msra.mxu0 %v309
    %811 = vmatprep.subr.mxu0 0.0
    %812 = vmatpush1.msra.mxu0 0.0
    %813 = vmatprep.subr.mxu0 0.0
    %814 = vmatpush1.msra.mxu0 0.0
    %815 = vmatprep.subr.mxu0 0.0
    %816 = vmatpush1.msra.mxu0 0.0
    %817 = vmatprep.subr.mxu0 0.0
    %818 = vmatpush1.msra.mxu0 0.0
    %819 = vmatprep.subr.mxu0 0.0
    %820 = vmatpush1.msra.mxu0 0.0
    %821 = vmatprep.subr.mxu0 0.0
    %822 = vmatpush1.msra.mxu0 0.0
    %823 = vmatprep.subr.mxu0 0.0
    %824 = vmatpush1.msra.mxu0 0.0
    %825 = vmatprep.subr.mxu0 0.0
    %826 = vmatpush1.msra.mxu0 0.0
    %827 = vmatprep.subr.mxu0 0.0
    %828 = vmatpush1.msra.mxu0 0.0
    %829 = vmatprep.subr.mxu0 0.0
    %830 = vmatpush1.msra.mxu0 0.0
    %831 = vmatprep.subr.mxu0 0.0
    %832 = vmatpush1.msra.mxu0 0.0
    %833 = vmatprep.subr.mxu0 0.0
    %834 = vmatpush1.msra.mxu0 0.0
    %835 = vmatprep.subr.mxu0 0.0
    %836 = vmatpush1.msra.mxu0 0.0
    %837 = vmatprep.subr.mxu0 0.0
    %838 = vmatpush1.msra.mxu0 0.0
    %839 = vmatprep.subr.mxu0 0.0
    %840 = vmatpush1.msra.mxu0 0.0
    %841 = vmatprep.subr.mxu0 0.0
    %842 = vmatpush1.msra.mxu0 0.0
    %843 = vmatprep.subr.mxu0 0.0
    %844 = vmatpush1.msra.mxu0 0.0
    %845 = vmatprep.subr.mxu0 0.0
    %846 = vmatpush1.msra.mxu0 0.0
    %847 = vmatprep.subr.mxu0 0.0
    %848 = vmatpush1.msra.mxu0 0.0
    %849 = vmatprep.subr.mxu0 0.0
    %850 = vmatpush1.msra.mxu0 0.0
    %851 = vmatprep.subr.mxu0 0.0
    %852 = vmatpush1.msra.mxu0 0.0
    %853 = vmatprep.subr.mxu0 0.0
    %854 = vmatpush1.msra.mxu0 0.0
    %855 = vmatprep.subr.mxu0 0.0
    %856 = vmatpush1.msra.mxu0 0.0
    %857 = vmatprep.subr.mxu0 0.0
    %858 = vmatpush1.msra.mxu0 0.0
    %859 = vmatprep.subr.mxu0 0.0
    %860 = vmatpush1.msra.mxu0 0.0
    %861 = vmatprep.subr.mxu0 0.0
    %862 = vmatpush1.msra.mxu0 0.0
    %863 = vmatprep.subr.mxu0 0.0
    %864 = vmatpush1.msra.mxu0 0.0
    %865 = vmatprep.subr.mxu0 0.0
    %866 = vmatpush1.msra.mxu0 0.0
    %867 = vmatprep.mubr.f32.mxu0 0.0
    %868 = vmatmul.mubr.f32.gmra.mrb[0].mxu0 %v799
    %v869 = vpop.f32.mrb[0].mxu0
    %v870 = vadd.f32 0.0, %v869
    %v871 = vpop.f32.mrb[0].mxu0
    %872 = vmatprep.mubr.f32.mxu0 0.0
    %873 = vmatmul.mubr.f32.gmra.mrb[0].mxu0 %v801
    %v874 = vpop.f32.mrb[0].mxu0
    %v875 = vadd.f32 0.0, %v874
    %v876 = vpop.f32.mrb[0].mxu0
    %877 = vdwg.mxu0
    %v878 = vadd.f32 %v791, %v870
    %v879 = vadd.f32 %v792, %v875
    %v880 = vxor.u32 %v878, 2147483648
    %v881 = vxor.u32 %v879, 2147483648
    %v882 = vmul.f32 %v880, 1.442695
    %v883 = vpow.pop %v882
    %v884 = vmul.f32 %v881, 1.442695
    %v885 = vpow.pop %v884
    %v886 = vadd.f32 %v883, 1.0
    %v887 = vadd.f32 %v885, 1.0
    %v888 = vrcp.pop %v886
    %v889 = vmul.f32 1.0, %v888
    %v890 = vrcp.pop %v887
    %v891 = vmul.f32 1.0, %v890
    %v892 = vadd.f32 %v870, %v412
    %v893 = vadd.f32 %v875, %v412
    %896 = vrot.lane.b32.xlu0 %v892, 64
    %v897 = vpop.permute.xlu0 %896
    %898 = vrot.lane.b32.xlu0 %v893, 64
    %v899 = vpop.permute.xlu0 %898
    %v902 = vmul.f32 %v889, %v897
    %v903 = vmul.f32 %v891, %v899
    %906 = vrot.lane.b32.xlu0 %v902, 64
    %v907 = vpop.permute.xlu0 %906
    %908 = vrot.lane.b32.xlu0 %v903, 64
    %v909 = vpop.permute.xlu0 %908
    %v912 = vadd.f32 %v791, %v907
    %v913 = vadd.f32 %v792, %v909
    %v914 = vtanh.pop %v912
    %v915 = vtanh.pop %v913
    %v916 = vsub.f32 1.0, %v889
    %v917 = vsub.f32 1.0, %v891
    %920 = vrot.lane.b32.xlu0 %v914, 96
    %v921 = vpop.permute.xlu0 %920
    %922 = vrot.lane.b32.xlu0 %v915, 96
    %v923 = vpop.permute.xlu0 %922
    %v926 = vmul.f32 %v916, %v921
    %v927 = vmul.f32 %v917, %v923
    %v928 = vmul.f32 %v889, %v789
    %v929 = vmul.f32 %v891, %v790
    %v930 = vadd.f32 %v926, %v928
    %v931 = vadd.f32 %v927, %v929
    %vm932 = vcmp.gt.s32.totalorder %v304, 3
    %vm933 = vcmp.gt.s32.totalorder %v305, 3
    %v934 = vsel %vm932, 1, 0
    %v935 = vsel %vm933, 1, 0
    %936 = vset.pattern.permute.xlu0 0
    %937 = vperm.xlu0 %936, %v934
    %v938 = vpop.permute.xlu0 %937
    %939 = vset.pattern.permute.xlu0 0
    %940 = vperm.xlu0 %939, %v935
    %v941 = vpop.permute.xlu0 %940
    %vm942 = vcmp.eq.s32.totalorder %v938, 1
    %vm943 = vcmp.eq.s32.totalorder %v941, 1
    %v944 = vsel %vm942, %v930, -inf
    %v945 = vsel %vm943, %v931, -inf
    %v946 = vmax.f32 %v787, %v944
    %v947 = vmax.f32 %v788, %v945
    %v948 = vsel %vm942, %v930, %v789
    %v949 = vsel %vm943, %v931, %v790
    %v950 = vld [vmem:[#allocation2 + $0x40] sm:$0xff]
    %v951 = vld [vmem:[#allocation2 + $0x48] sm:$0xff]
    %954 = vrot.lane.b32.xlu0 %v948, 96
    %v955 = vpop.permute.xlu0 %954
    %956 = vrot.lane.b32.xlu0 %v949, 96
    %v957 = vpop.permute.xlu0 %956
    %v958 = vsel %vm93, %v955, 0
    %v960 = vsel %vm93, %v957, 0
    %962 = vmatprep.subr.mxu0 0.0
    %963 = vmatpush1.msra.mxu0 %v306
    %964 = vmatprep.subr.mxu0 0.0
    %965 = vmatpush1.msra.mxu0 %v307
    %966 = vmatprep.subr.mxu0 0.0
    %967 = vmatpush1.msra.mxu0 %v308
    %968 = vmatprep.subr.mxu0 0.0
    %969 = vmatpush1.msra.mxu0 %v309
    %970 = vmatprep.subr.mxu0 0.0
    %971 = vmatpush1.msra.mxu0 0.0
    %972 = vmatprep.subr.mxu0 0.0
    %973 = vmatpush1.msra.mxu0 0.0
    %974 = vmatprep.subr.mxu0 0.0
    %975 = vmatpush1.msra.mxu0 0.0
    %976 = vmatprep.subr.mxu0 0.0
    %977 = vmatpush1.msra.mxu0 0.0
    %978 = vmatprep.subr.mxu0 0.0
    %979 = vmatpush1.msra.mxu0 0.0
    %980 = vmatprep.subr.mxu0 0.0
    %981 = vmatpush1.msra.mxu0 0.0
    %982 = vmatprep.subr.mxu0 0.0
    %983 = vmatpush1.msra.mxu0 0.0
    %984 = vmatprep.subr.mxu0 0.0
    %985 = vmatpush1.msra.mxu0 0.0
    %986 = vmatprep.subr.mxu0 0.0
    %987 = vmatpush1.msra.mxu0 0.0
    %988 = vmatprep.subr.mxu0 0.0
    %989 = vmatpush1.msra.mxu0 0.0
    %990 = vmatprep.subr.mxu0 0.0
    %991 = vmatpush1.msra.mxu0 0.0
    %992 = vmatprep.subr.mxu0 0.0
    %993 = vmatpush1.msra.mxu0 0.0
    %994 = vmatprep.subr.mxu0 0.0
    %995 = vmatpush1.msra.mxu0 0.0
    %996 = vmatprep.subr.mxu0 0.0
    %997 = vmatpush1.msra.mxu0 0.0
    %998 = vmatprep.subr.mxu0 0.0
    %999 = vmatpush1.msra.mxu0 0.0
    %1000 = vmatprep.subr.mxu0 0.0
    %1001 = vmatpush1.msra.mxu0 0.0
    %1002 = vmatprep.subr.mxu0 0.0
    %1003 = vmatpush1.msra.mxu0 0.0
    %1004 = vmatprep.subr.mxu0 0.0
    %1005 = vmatpush1.msra.mxu0 0.0
    %1006 = vmatprep.subr.mxu0 0.0
    %1007 = vmatpush1.msra.mxu0 0.0
    %1008 = vmatprep.subr.mxu0 0.0
    %1009 = vmatpush1.msra.mxu0 0.0
    %1010 = vmatprep.subr.mxu0 0.0
    %1011 = vmatpush1.msra.mxu0 0.0
    %1012 = vmatprep.subr.mxu0 0.0
    %1013 = vmatpush1.msra.mxu0 0.0
    %1014 = vmatprep.subr.mxu0 0.0
    %1015 = vmatpush1.msra.mxu0 0.0
    %1016 = vmatprep.subr.mxu0 0.0
    %1017 = vmatpush1.msra.mxu0 0.0
    %1018 = vmatprep.subr.mxu0 0.0
    %1019 = vmatpush1.msra.mxu0 0.0
    %1020 = vmatprep.subr.mxu0 0.0
    %1021 = vmatpush1.msra.mxu0 0.0
    %1022 = vmatprep.subr.mxu0 0.0
    %1023 = vmatpush1.msra.mxu0 0.0
    %1024 = vmatprep.subr.mxu0 0.0
    %1025 = vmatpush1.msra.mxu0 0.0
    %1026 = vmatprep.mubr.f32.mxu0 0.0
    %1027 = vmatmul.mubr.f32.gmra.mrb[0].mxu0 %v958
    %v1028 = vpop.f32.mrb[0].mxu0
    %v1029 = vadd.f32 0.0, %v1028
    %v1030 = vpop.f32.mrb[0].mxu0
    %1031 = vmatprep.mubr.f32.mxu0 0.0
    %1032 = vmatmul.mubr.f32.gmra.mrb[0].mxu0 %v960
    %v1033 = vpop.f32.mrb[0].mxu0
    %v1034 = vadd.f32 0.0, %v1033
    %v1035 = vpop.f32.mrb[0].mxu0
    %1036 = vdwg.mxu0
    %v1037 = vadd.f32 %v950, %v1029
    %v1038 = vadd.f32 %v951, %v1034
    %v1039 = vxor.u32 %v1037, 2147483648
    %v1040 = vxor.u32 %v1038, 2147483648
    %v1041 = vmul.f32 %v1039, 1.442695
    %v1042 = vpow.pop %v1041
    %v1043 = vmul.f32 %v1040, 1.442695
    %v1044 = vpow.pop %v1043
    %v1045 = vadd.f32 %v1042, 1.0
    %v1046 = vadd.f32 %v1044, 1.0
    %v1047 = vrcp.pop %v1045
    %v1048 = vmul.f32 1.0, %v1047
    %v1049 = vrcp.pop %v1046
    %v1050 = vmul.f32 1.0, %v1049
    %v1051 = vadd.f32 %v1029, %v412
    %v1052 = vadd.f32 %v1034, %v412
    %1055 = vrot.lane.b32.xlu0 %v1051, 64
    %v1056 = vpop.permute.xlu0 %1055
    %1057 = vrot.lane.b32.xlu0 %v1052, 64
    %v1058 = vpop.permute.xlu0 %1057
    %v1061 = vmul.f32 %v1048, %v1056
    %v1062 = vmul.f32 %v1050, %v1058
    %1065 = vrot.lane.b32.xlu0 %v1061, 64
    %v1066 = vpop.permute.xlu0 %1065
    %1067 = vrot.lane.b32.xlu0 %v1062, 64
    %v1068 = vpop.permute.xlu0 %1067
    %v1071 = vadd.f32 %v950, %v1066
    %v1072 = vadd.f32 %v951, %v1068
    %v1073 = vtanh.pop %v1071
    %v1074 = vtanh.pop %v1072
    %v1075 = vsub.f32 1.0, %v1048
    %v1076 = vsub.f32 1.0, %v1050
    %1079 = vrot.lane.b32.xlu0 %v1073, 96
    %v1080 = vpop.permute.xlu0 %1079
    %1081 = vrot.lane.b32.xlu0 %v1074, 96
    %v1082 = vpop.permute.xlu0 %1081
    %v1085 = vmul.f32 %v1075, %v1080
    %v1086 = vmul.f32 %v1076, %v1082
    %v1087 = vmul.f32 %v1048, %v948
    %v1088 = vmul.f32 %v1050, %v949
    %v1089 = vadd.f32 %v1085, %v1087
    %v1090 = vadd.f32 %v1086, %v1088
    %vm1091 = vcmp.gt.s32.totalorder %v304, 4
    %vm1092 = vcmp.gt.s32.totalorder %v305, 4
    %v1093 = vsel %vm1091, 1, 0
    %v1094 = vsel %vm1092, 1, 0
    %1095 = vset.pattern.permute.xlu0 0
    %1096 = vperm.xlu0 %1095, %v1093
    %v1097 = vpop.permute.xlu0 %1096
    %1098 = vset.pattern.permute.xlu0 0
    %1099 = vperm.xlu0 %1098, %v1094
    %v1100 = vpop.permute.xlu0 %1099
    %vm1101 = vcmp.eq.s32.totalorder %v1097, 1
    %vm1102 = vcmp.eq.s32.totalorder %v1100, 1
    %v1103 = vsel %vm1101, %v1089, -inf
    %v1104 = vsel %vm1102, %v1090, -inf
    %v1105 = vmax.f32 %v946, %v1103
    %v1106 = vmax.f32 %v947, %v1104
    %v1107 = vsel %vm1101, %v1089, %v948
    %v1108 = vsel %vm1102, %v1090, %v949
    %v1109 = vld [vmem:[#allocation2 + $0x50] sm:$0xff]
    %v1110 = vld [vmem:[#allocation2 + $0x58] sm:$0xff]
    %1113 = vrot.lane.b32.xlu0 %v1107, 96
    %v1114 = vpop.permute.xlu0 %1113
    %1115 = vrot.lane.b32.xlu0 %v1108, 96
    %v1116 = vpop.permute.xlu0 %1115
    %v1117 = vsel %vm93, %v1114, 0
    %v1119 = vsel %vm93, %v1116, 0
    %1121 = vmatprep.subr.mxu0 0.0
    %1122 = vmatpush1.msra.mxu0 %v306
    %1123 = vmatprep.subr.mxu0 0.0
    %1124 = vmatpush1.msra.mxu0 %v307
    %1125 = vmatprep.subr.mxu0 0.0
    %1126 = vmatpush1.msra.mxu0 %v308
    %1127 = vmatprep.subr.mxu0 0.0
    %1128 = vmatpush1.msra.mxu0 %v309
    %1129 = vmatprep.subr.mxu0 0.0
    %1130 = vmatpush1.msra.mxu0 0.0
    %1131 = vmatprep.subr.mxu0 0.0
    %1132 = vmatpush1.msra.mxu0 0.0
    %1133 = vmatprep.subr.mxu0 0.0
    %1134 = vmatpush1.msra.mxu0 0.0
    %1135 = vmatprep.subr.mxu0 0.0
    %1136 = vmatpush1.msra.mxu0 0.0
    %1137 = vmatprep.subr.mxu0 0.0
    %1138 = vmatpush1.msra.mxu0 0.0
    %1139 = vmatprep.subr.mxu0 0.0
    %1140 = vmatpush1.msra.mxu0 0.0
    %1141 = vmatprep.subr.mxu0 0.0
    %1142 = vmatpush1.msra.mxu0 0.0
    %1143 = vmatprep.subr.mxu0 0.0
    %1144 = vmatpush1.msra.mxu0 0.0
    %1145 = vmatprep.subr.mxu0 0.0
    %1146 = vmatpush1.msra.mxu0 0.0
    %1147 = vmatprep.subr.mxu0 0.0
    %1148 = vmatpush1.msra.mxu0 0.0
    %1149 = vmatprep.subr.mxu0 0.0
    %1150 = vmatpush1.msra.mxu0 0.0
    %1151 = vmatprep.subr.mxu0 0.0
    %1152 = vmatpush1.msra.mxu0 0.0
    %1153 = vmatprep.subr.mxu0 0.0
    %1154 = vmatpush1.msra.mxu0 0.0
    %1155 = vmatprep.subr.mxu0 0.0
    %1156 = vmatpush1.msra.mxu0 0.0
    %1157 = vmatprep.subr.mxu0 0.0
    %1158 = vmatpush1.msra.mxu0 0.0
    %1159 = vmatprep.subr.mxu0 0.0
    %1160 = vmatpush1.msra.mxu0 0.0
    %1161 = vmatprep.subr.mxu0 0.0
    %1162 = vmatpush1.msra.mxu0 0.0
    %1163 = vmatprep.subr.mxu0 0.0
    %1164 = vmatpush1.msra.mxu0 0.0
    %1165 = vmatprep.subr.mxu0 0.0
    %1166 = vmatpush1.msra.mxu0 0.0
    %1167 = vmatprep.subr.mxu0 0.0
    %1168 = vmatpush1.msra.mxu0 0.0
    %1169 = vmatprep.subr.mxu0 0.0
    %1170 = vmatpush1.msra.mxu0 0.0
    %1171 = vmatprep.subr.mxu0 0.0
    %1172 = vmatpush1.msra.mxu0 0.0
    %1173 = vmatprep.subr.mxu0 0.0
    %1174 = vmatpush1.msra.mxu0 0.0
    %1175 = vmatprep.subr.mxu0 0.0
    %1176 = vmatpush1.msra.mxu0 0.0
    %1177 = vmatprep.subr.mxu0 0.0
    %1178 = vmatpush1.msra.mxu0 0.0
    %1179 = vmatprep.subr.mxu0 0.0
    %1180 = vmatpush1.msra.mxu0 0.0
    %1181 = vmatprep.subr.mxu0 0.0
    %1182 = vmatpush1.msra.mxu0 0.0
    %1183 = vmatprep.subr.mxu0 0.0
    %1184 = vmatpush1.msra.mxu0 0.0
    %1185 = vmatprep.mubr.f32.mxu0 0.0
    %1186 = vmatmul.mubr.f32.gmra.mrb[0].mxu0 %v1117
    %v1187 = vpop.f32.mrb[0].mxu0
    %v1188 = vadd.f32 0.0, %v1187
    %v1189 = vpop.f32.mrb[0].mxu0
    %1190 = vmatprep.mubr.f32.mxu0 0.0
    %1191 = vmatmul.mubr.f32.gmra.mrb[0].mxu0 %v1119
    %v1192 = vpop.f32.mrb[0].mxu0
    %v1193 = vadd.f32 0.0, %v1192
    %v1194 = vpop.f32.mrb[0].mxu0
    %1195 = vdwg.mxu0
    %v1196 = vadd.f32 %v1109, %v1188
    %v1197 = vadd.f32 %v1110, %v1193
    %v1198 = vxor.u32 %v1196, 2147483648
    %v1199 = vxor.u32 %v1197, 2147483648
    %v1200 = vmul.f32 %v1198, 1.442695
    %v1201 = vpow.pop %v1200
    %v1202 = vmul.f32 %v1199, 1.442695
    %v1203 = vpow.pop %v1202
    %v1204 = vadd.f32 %v1201, 1.0
    %v1205 = vadd.f32 %v1203, 1.0
    %v1206 = vrcp.pop %v1204
    %v1207 = vmul.f32 1.0, %v1206
    %v1208 = vrcp.pop %v1205
    %v1209 = vmul.f32 1.0, %v1208
    %v1210 = vadd.f32 %v1188, %v412
    %v1211 = vadd.f32 %v1193, %v412
    %1214 = vrot.lane.b32.xlu0 %v1210, 64
    %v1215 = vpop.permute.xlu0 %1214
    %1216 = vrot.lane.b32.xlu0 %v1211, 64
    %v1217 = vpop.permute.xlu0 %1216
    %v1220 = vmul.f32 %v1207, %v1215
    %v1221 = vmul.f32 %v1209, %v1217
    %1224 = vrot.lane.b32.xlu0 %v1220, 64
    %v1225 = vpop.permute.xlu0 %1224
    %1226 = vrot.lane.b32.xlu0 %v1221, 64
    %v1227 = vpop.permute.xlu0 %1226
    %v1230 = vadd.f32 %v1109, %v1225
    %v1231 = vadd.f32 %v1110, %v1227
    %v1232 = vtanh.pop %v1230
    %v1233 = vtanh.pop %v1231
    %v1234 = vsub.f32 1.0, %v1207
    %v1235 = vsub.f32 1.0, %v1209
    %1238 = vrot.lane.b32.xlu0 %v1232, 96
    %v1239 = vpop.permute.xlu0 %1238
    %1240 = vrot.lane.b32.xlu0 %v1233, 96
    %v1241 = vpop.permute.xlu0 %1240
    %v1244 = vmul.f32 %v1234, %v1239
    %v1245 = vmul.f32 %v1235, %v1241
    %v1246 = vmul.f32 %v1207, %v1107
    %v1247 = vmul.f32 %v1209, %v1108
    %v1248 = vadd.f32 %v1244, %v1246
    %v1249 = vadd.f32 %v1245, %v1247
    %vm1250 = vcmp.gt.s32.totalorder %v304, 5
    %vm1251 = vcmp.gt.s32.totalorder %v305, 5
    %v1252 = vsel %vm1250, 1, 0
    %v1253 = vsel %vm1251, 1, 0
    %1254 = vset.pattern.permute.xlu0 0
    %1255 = vperm.xlu0 %1254, %v1252
    %v1256 = vpop.permute.xlu0 %1255
    %1257 = vset.pattern.permute.xlu0 0
    %1258 = vperm.xlu0 %1257, %v1253
    %v1259 = vpop.permute.xlu0 %1258
    %vm1260 = vcmp.eq.s32.totalorder %v1256, 1
    %vm1261 = vcmp.eq.s32.totalorder %v1259, 1
    %v1262 = vsel %vm1260, %v1248, -inf
    %v1263 = vsel %vm1261, %v1249, -inf
    %v1264 = vmax.f32 %v1105, %v1262
    %v1265 = vmax.f32 %v1106, %v1263
    %v1266 = vsel %vm1260, %v1248, %v1107
    %v1267 = vsel %vm1261, %v1249, %v1108
    %v1268 = vld [vmem:[#allocation2 + $0x60] sm:$0xff]
    %v1269 = vld [vmem:[#allocation2 + $0x68] sm:$0xff]
    %1272 = vrot.lane.b32.xlu0 %v1266, 96
    %v1273 = vpop.permute.xlu0 %1272
    %1274 = vrot.lane.b32.xlu0 %v1267, 96
    %v1275 = vpop.permute.xlu0 %1274
    %v1276 = vsel %vm93, %v1273, 0
    %v1278 = vsel %vm93, %v1275, 0
    %1280 = vmatprep.subr.mxu0 0.0
    %1281 = vmatpush1.msra.mxu0 %v306
    %1282 = vmatprep.subr.mxu0 0.0
    %1283 = vmatpush1.msra.mxu0 %v307
    %1284 = vmatprep.subr.mxu0 0.0
    %1285 = vmatpush1.msra.mxu0 %v308
    %1286 = vmatprep.subr.mxu0 0.0
    %1287 = vmatpush1.msra.mxu0 %v309
    %1288 = vmatprep.subr.mxu0 0.0
    %1289 = vmatpush1.msra.mxu0 0.0
    %1290 = vmatprep.subr.mxu0 0.0
    %1291 = vmatpush1.msra.mxu0 0.0
    %1292 = vmatprep.subr.mxu0 0.0
    %1293 = vmatpush1.msra.mxu0 0.0
    %1294 = vmatprep.subr.mxu0 0.0
    %1295 = vmatpush1.msra.mxu0 0.0
    %1296 = vmatprep.subr.mxu0 0.0
    %1297 = vmatpush1.msra.mxu0 0.0
    %1298 = vmatprep.subr.mxu0 0.0
    %1299 = vmatpush1.msra.mxu0 0.0
    %1300 = vmatprep.subr.mxu0 0.0
    %1301 = vmatpush1.msra.mxu0 0.0
    %1302 = vmatprep.subr.mxu0 0.0
    %1303 = vmatpush1.msra.mxu0 0.0
    %1304 = vmatprep.subr.mxu0 0.0
    %1305 = vmatpush1.msra.mxu0 0.0
    %1306 = vmatprep.subr.mxu0 0.0
    %1307 = vmatpush1.msra.mxu0 0.0
    %1308 = vmatprep.subr.mxu0 0.0
    %1309 = vmatpush1.msra.mxu0 0.0
    %1310 = vmatprep.subr.mxu0 0.0
    %1311 = vmatpush1.msra.mxu0 0.0
    %1312 = vmatprep.subr.mxu0 0.0
    %1313 = vmatpush1.msra.mxu0 0.0
    %1314 = vmatprep.subr.mxu0 0.0
    %1315 = vmatpush1.msra.mxu0 0.0
    %1316 = vmatprep.subr.mxu0 0.0
    %1317 = vmatpush1.msra.mxu0 0.0
    %1318 = vmatprep.subr.mxu0 0.0
    %1319 = vmatpush1.msra.mxu0 0.0
    %1320 = vmatprep.subr.mxu0 0.0
    %1321 = vmatpush1.msra.mxu0 0.0
    %1322 = vmatprep.subr.mxu0 0.0
    %1323 = vmatpush1.msra.mxu0 0.0
    %1324 = vmatprep.subr.mxu0 0.0
    %1325 = vmatpush1.msra.mxu0 0.0
    %1326 = vmatprep.subr.mxu0 0.0
    %1327 = vmatpush1.msra.mxu0 0.0
    %1328 = vmatprep.subr.mxu0 0.0
    %1329 = vmatpush1.msra.mxu0 0.0
    %1330 = vmatprep.subr.mxu0 0.0
    %1331 = vmatpush1.msra.mxu0 0.0
    %1332 = vmatprep.subr.mxu0 0.0
    %1333 = vmatpush1.msra.mxu0 0.0
    %1334 = vmatprep.subr.mxu0 0.0
    %1335 = vmatpush1.msra.mxu0 0.0
    %1336 = vmatprep.subr.mxu0 0.0
    %1337 = vmatpush1.msra.mxu0 0.0
    %1338 = vmatprep.subr.mxu0 0.0
    %1339 = vmatpush1.msra.mxu0 0.0
    %1340 = vmatprep.subr.mxu0 0.0
    %1341 = vmatpush1.msra.mxu0 0.0
    %1342 = vmatprep.subr.mxu0 0.0
    %1343 = vmatpush1.msra.mxu0 0.0
    %1344 = vmatprep.mubr.f32.mxu0 0.0
    %1345 = vmatmul.mubr.f32.gmra.mrb[0].mxu0 %v1276
    %v1346 = vpop.f32.mrb[0].mxu0
    %v1347 = vadd.f32 0.0, %v1346
    %v1348 = vpop.f32.mrb[0].mxu0
    %1349 = vmatprep.mubr.f32.mxu0 0.0
    %1350 = vmatmul.mubr.f32.gmra.mrb[0].mxu0 %v1278
    %v1351 = vpop.f32.mrb[0].mxu0
    %v1352 = vadd.f32 0.0, %v1351
    %v1353 = vpop.f32.mrb[0].mxu0
    %1354 = vdwg.mxu0
    %v1355 = vadd.f32 %v1268, %v1347
    %v1356 = vadd.f32 %v1269, %v1352
    %v1357 = vxor.u32 %v1355, 2147483648
    %v1358 = vxor.u32 %v1356, 2147483648
    %v1359 = vmul.f32 %v1357, 1.442695
    %v1360 = vpow.pop %v1359
    %v1361 = vmul.f32 %v1358, 1.442695
    %v1362 = vpow.pop %v1361
    %v1363 = vadd.f32 %v1360, 1.0
    %v1364 = vadd.f32 %v1362, 1.0
    %v1365 = vrcp.pop %v1363
    %v1366 = vmul.f32 1.0, %v1365
    %v1367 = vrcp.pop %v1364
    %v1368 = vmul.f32 1.0, %v1367
    %v1369 = vadd.f32 %v1347, %v412
    %v1370 = vadd.f32 %v1352, %v412
    %1373 = vrot.lane.b32.xlu0 %v1369, 64
    %v1374 = vpop.permute.xlu0 %1373
    %1375 = vrot.lane.b32.xlu0 %v1370, 64
    %v1376 = vpop.permute.xlu0 %1375
    %v1379 = vmul.f32 %v1366, %v1374
    %v1380 = vmul.f32 %v1368, %v1376
    %1383 = vrot.lane.b32.xlu0 %v1379, 64
    %v1384 = vpop.permute.xlu0 %1383
    %1385 = vrot.lane.b32.xlu0 %v1380, 64
    %v1386 = vpop.permute.xlu0 %1385
    %v1389 = vadd.f32 %v1268, %v1384
    %v1390 = vadd.f32 %v1269, %v1386
    %v1391 = vtanh.pop %v1389
    %v1392 = vtanh.pop %v1390
    %v1393 = vsub.f32 1.0, %v1366
    %v1394 = vsub.f32 1.0, %v1368
    %1397 = vrot.lane.b32.xlu0 %v1391, 96
    %v1398 = vpop.permute.xlu0 %1397
    %1399 = vrot.lane.b32.xlu0 %v1392, 96
    %v1400 = vpop.permute.xlu0 %1399
    %v1403 = vmul.f32 %v1393, %v1398
    %v1404 = vmul.f32 %v1394, %v1400
    %v1405 = vmul.f32 %v1366, %v1266
    %v1406 = vmul.f32 %v1368, %v1267
    %v1407 = vadd.f32 %v1403, %v1405
    %v1408 = vadd.f32 %v1404, %v1406
    %vm1409 = vcmp.gt.s32.totalorder %v304, 6
    %vm1410 = vcmp.gt.s32.totalorder %v305, 6
    %v1411 = vsel %vm1409, 1, 0
    %v1412 = vsel %vm1410, 1, 0
    %1413 = vset.pattern.permute.xlu0 0
    %1414 = vperm.xlu0 %1413, %v1411
    %v1415 = vpop.permute.xlu0 %1414
    %1416 = vset.pattern.permute.xlu0 0
    %1417 = vperm.xlu0 %1416, %v1412
    %v1418 = vpop.permute.xlu0 %1417
    %vm1419 = vcmp.eq.s32.totalorder %v1415, 1
    %vm1420 = vcmp.eq.s32.totalorder %v1418, 1
    %v1421 = vsel %vm1419, %v1407, -inf
    %v1422 = vsel %vm1420, %v1408, -inf
    %v1423 = vmax.f32 %v1264, %v1421
    %v1424 = vmax.f32 %v1265, %v1422
    %v1425 = vsel %vm1419, %v1407, %v1266
    %v1426 = vsel %vm1420, %v1408, %v1267
    %v1427 = vld [vmem:[#allocation2 + $0x70] sm:$0xff]
    %v1428 = vld [vmem:[#allocation2 + $0x78] sm:$0xff]
    %1431 = vrot.lane.b32.xlu0 %v1425, 96
    %v1432 = vpop.permute.xlu0 %1431
    %1433 = vrot.lane.b32.xlu0 %v1426, 96
    %v1434 = vpop.permute.xlu0 %1433
    %v1435 = vsel %vm93, %v1432, 0
    %v1437 = vsel %vm93, %v1434, 0
    %1439 = vmatprep.subr.mxu0 0.0
    %1440 = vmatpush1.msra.mxu0 %v306
    %1441 = vmatprep.subr.mxu0 0.0
    %1442 = vmatpush1.msra.mxu0 %v307
    %1443 = vmatprep.subr.mxu0 0.0
    %1444 = vmatpush1.msra.mxu0 %v308
    %1445 = vmatprep.subr.mxu0 0.0
    %1446 = vmatpush1.msra.mxu0 %v309
    %1447 = vmatprep.subr.mxu0 0.0
    %1448 = vmatpush1.msra.mxu0 0.0
    %1449 = vmatprep.subr.mxu0 0.0
    %1450 = vmatpush1.msra.mxu0 0.0
    %1451 = vmatprep.subr.mxu0 0.0
    %1452 = vmatpush1.msra.mxu0 0.0
    %1453 = vmatprep.subr.mxu0 0.0
    %1454 = vmatpush1.msra.mxu0 0.0
    %1455 = vmatprep.subr.mxu0 0.0
    %1456 = vmatpush1.msra.mxu0 0.0
    %1457 = vmatprep.subr.mxu0 0.0
    %1458 = vmatpush1.msra.mxu0 0.0
    %1459 = vmatprep.subr.mxu0 0.0
    %1460 = vmatpush1.msra.mxu0 0.0
    %1461 = vmatprep.subr.mxu0 0.0
    %1462 = vmatpush1.msra.mxu0 0.0
    %1463 = vmatprep.subr.mxu0 0.0
    %1464 = vmatpush1.msra.mxu0 0.0
    %1465 = vmatprep.subr.mxu0 0.0
    %1466 = vmatpush1.msra.mxu0 0.0
    %1467 = vmatprep.subr.mxu0 0.0
    %1468 = vmatpush1.msra.mxu0 0.0
    %1469 = vmatprep.subr.mxu0 0.0
    %1470 = vmatpush1.msra.mxu0 0.0
    %1471 = vmatprep.subr.mxu0 0.0
    %1472 = vmatpush1.msra.mxu0 0.0
    %1473 = vmatprep.subr.mxu0 0.0
    %1474 = vmatpush1.msra.mxu0 0.0
    %1475 = vmatprep.subr.mxu0 0.0
    %1476 = vmatpush1.msra.mxu0 0.0
    %1477 = vmatprep.subr.mxu0 0.0
    %1478 = vmatpush1.msra.mxu0 0.0
    %1479 = vmatprep.subr.mxu0 0.0
    %1480 = vmatpush1.msra.mxu0 0.0
    %1481 = vmatprep.subr.mxu0 0.0
    %1482 = vmatpush1.msra.mxu0 0.0
    %1483 = vmatprep.subr.mxu0 0.0
    %1484 = vmatpush1.msra.mxu0 0.0
    %1485 = vmatprep.subr.mxu0 0.0
    %1486 = vmatpush1.msra.mxu0 0.0
    %1487 = vmatprep.subr.mxu0 0.0
    %1488 = vmatpush1.msra.mxu0 0.0
    %1489 = vmatprep.subr.mxu0 0.0
    %1490 = vmatpush1.msra.mxu0 0.0
    %1491 = vmatprep.subr.mxu0 0.0
    %1492 = vmatpush1.msra.mxu0 0.0
    %1493 = vmatprep.subr.mxu0 0.0
    %1494 = vmatpush1.msra.mxu0 0.0
    %1495 = vmatprep.subr.mxu0 0.0
    %1496 = vmatpush1.msra.mxu0 0.0
    %1497 = vmatprep.subr.mxu0 0.0
    %1498 = vmatpush1.msra.mxu0 0.0
    %1499 = vmatprep.subr.mxu0 0.0
    %1500 = vmatpush1.msra.mxu0 0.0
    %1501 = vmatprep.subr.mxu0 0.0
    %1502 = vmatpush1.msra.mxu0 0.0
    %1503 = vmatprep.mubr.f32.mxu0 0.0
    %1504 = vmatmul.mubr.f32.gmra.mrb[0].mxu0 %v1435
    %v1505 = vpop.f32.mrb[0].mxu0
    %v1506 = vadd.f32 0.0, %v1505
    %v1507 = vpop.f32.mrb[0].mxu0
    %1508 = vmatprep.mubr.f32.mxu0 0.0
    %1509 = vmatmul.mubr.f32.gmra.mrb[0].mxu0 %v1437
    %v1510 = vpop.f32.mrb[0].mxu0
    %v1511 = vadd.f32 0.0, %v1510
    %v1512 = vpop.f32.mrb[0].mxu0
    %1513 = vdwg.mxu0
    %v1514 = vadd.f32 %v1427, %v1506
    %v1515 = vadd.f32 %v1428, %v1511
    %v1516 = vxor.u32 %v1514, 2147483648
    %v1517 = vxor.u32 %v1515, 2147483648
    %v1518 = vmul.f32 %v1516, 1.442695
    %v1519 = vpow.pop %v1518
    %v1520 = vmul.f32 %v1517, 1.442695
    %v1521 = vpow.pop %v1520
    %v1522 = vadd.f32 %v1519, 1.0
    %v1523 = vadd.f32 %v1521, 1.0
    %v1524 = vrcp.pop %v1522
    %v1525 = vmul.f32 1.0, %v1524
    %v1526 = vrcp.pop %v1523
    %v1527 = vmul.f32 1.0, %v1526
    %v1528 = vadd.f32 %v1506, %v412
    %v1529 = vadd.f32 %v1511, %v412
    %1532 = vrot.lane.b32.xlu0 %v1528, 64
    %v1533 = vpop.permute.xlu0 %1532
    %1534 = vrot.lane.b32.xlu0 %v1529, 64
    %v1535 = vpop.permute.xlu0 %1534
    %v1538 = vmul.f32 %v1525, %v1533
    %v1539 = vmul.f32 %v1527, %v1535
    %1542 = vrot.lane.b32.xlu0 %v1538, 64
    %v1543 = vpop.permute.xlu0 %1542
    %1544 = vrot.lane.b32.xlu0 %v1539, 64
    %v1545 = vpop.permute.xlu0 %1544
    %v1548 = vadd.f32 %v1427, %v1543
    %v1549 = vadd.f32 %v1428, %v1545
    %v1550 = vtanh.pop %v1548
    %v1551 = vtanh.pop %v1549
    %v1552 = vsub.f32 1.0, %v1525
    %v1553 = vsub.f32 1.0, %v1527
    %1556 = vrot.lane.b32.xlu0 %v1550, 96
    %v1557 = vpop.permute.xlu0 %1556
    %1558 = vrot.lane.b32.xlu0 %v1551, 96
    %v1559 = vpop.permute.xlu0 %1558
    %v1562 = vmul.f32 %v1552, %v1557
    %v1563 = vmul.f32 %v1553, %v1559
    %v1564 = vmul.f32 %v1525, %v1425
    %v1565 = vmul.f32 %v1527, %v1426
    %v1566 = vadd.f32 %v1562, %v1564
    %v1567 = vadd.f32 %v1563, %v1565
    %vm1568 = vcmp.gt.s32.totalorder %v304, 7
    %vm1569 = vcmp.gt.s32.totalorder %v305, 7
    %v1570 = vsel %vm1568, 1, 0
    %v1571 = vsel %vm1569, 1, 0
    %1572 = vset.pattern.permute.xlu0 0
    %1573 = vperm.xlu0 %1572, %v1570
    %v1574 = vpop.permute.xlu0 %1573
    %1575 = vset.pattern.permute.xlu0 0
    %1576 = vperm.xlu0 %1575, %v1571
    %v1577 = vpop.permute.xlu0 %1576
    %vm1578 = vcmp.eq.s32.totalorder %v1574, 1
    %vm1579 = vcmp.eq.s32.totalorder %v1577, 1
    %v1580 = vsel %vm1578, %v1566, -inf
    %v1581 = vsel %vm1579, %v1567, -inf
    %v1582 = vmax.f32 %v1423, %v1580
    %v1583 = vmax.f32 %v1424, %v1581
    %v1584 = vlaneseq
    %v1585 = vand.u32 %v1584, 127
    %v1586 = vld [vmem:[%s9] sm:$0xff]
    %v1587 = vld [vmem:[%s9 + $0x8] sm:$0xff]
    %v1588 = vld [vmem:[%s9 + $0x10] sm:$0xff]
    %1589 = vset.pattern.permute.xlu0 0
    %1590 = vperm.xlu0 %1589, %v1586
    %v1591 = vpop.permute.xlu0 %1590
    %1592 = vset.pattern.permute.xlu0 0
    %1593 = vperm.xlu0 %1592, %v1587
    %v1594 = vpop.permute.xlu0 %1593
    %1595 = vset.pattern.permute.xlu0 0
    %1596 = vperm.xlu0 %1595, %v1588
    %v1597 = vpop.permute.xlu0 %1596
    %vm1598 = vcmp.eq.s32.totalorder %v1591, %v1585
    %vm1599 = vcmp.eq.s32.totalorder %v1594, %v1585
    %vm1600 = vcmp.eq.s32.totalorder %v1597, %v1585
    %v1601 = vsel %vm1598, 1, 0
    %v1602 = vsel %vm1599, 1, 0
    %v1603 = vsel %vm1600, 1, 0
    %v1604 = vcvt.s32.f32 %v1601
    %v1605 = vcvt.s32.f32 %v1602
    %v1606 = vcvt.s32.f32 %v1603
    %1609 = vrot.lane.b32.xlu0 %v1582, 96
    %v1610 = vpop.permute.xlu0 %1609
    %1611 = vrot.lane.b32.xlu0 %v1583, 96
    %v1612 = vpop.permute.xlu0 %1611
    %vm1615 = vcmask 130048
    %v1617 = vsel %vm1615, %v1604, 0
    %v1620 = vsel %vm1615, %v1605, 0
    %v1623 = vsel %vm1615, %v1606, 0
    %1625 = vmatprep.subr.mxu0 0.0
    %1626 = vmatpush1.msra.mxu0 %v1610
    %1627 = vmatprep.subr.mxu0 0.0
    %1628 = vmatpush1.msra.mxu0 %v1612
    %1629 = vmatprep.subr.mxu0 0.0
    %1630 = vmatpush1.msra.mxu0 0.0
    %1631 = vmatprep.subr.mxu0 0.0
    %1632 = vmatpush1.msra.mxu0 0.0
    %1633 = vmatprep.subr.mxu0 0.0
    %1634 = vmatpush1.msra.mxu0 0.0
    %1635 = vmatprep.subr.mxu0 0.0
    %1636 = vmatpush1.msra.mxu0 0.0
    %1637 = vmatprep.subr.mxu0 0.0
    %1638 = vmatpush1.msra.mxu0 0.0
    %1639 = vmatprep.subr.mxu0 0.0
    %1640 = vmatpush1.msra.mxu0 0.0
    %1641 = vmatprep.subr.mxu0 0.0
    %1642 = vmatpush1.msra.mxu0 0.0
    %1643 = vmatprep.subr.mxu0 0.0
    %1644 = vmatpush1.msra.mxu0 0.0
    %1645 = vmatprep.subr.mxu0 0.0
    %1646 = vmatpush1.msra.mxu0 0.0
    %1647 = vmatprep.subr.mxu0 0.0
    %1648 = vmatpush1.msra.mxu0 0.0
    %1649 = vmatprep.subr.mxu0 0.0
    %1650 = vmatpush1.msra.mxu0 0.0
    %1651 = vmatprep.subr.mxu0 0.0
    %1652 = vmatpush1.msra.mxu0 0.0
    %1653 = vmatprep.subr.mxu0 0.0
    %1654 = vmatpush1.msra.mxu0 0.0
    %1655 = vmatprep.subr.mxu0 0.0
    %1656 = vmatpush1.msra.mxu0 0.0
    %1657 = vmatprep.subr.mxu0 0.0
    %1658 = vmatpush1.msra.mxu0 0.0
    %1659 = vmatprep.subr.mxu0 0.0
    %1660 = vmatpush1.msra.mxu0 0.0
    %1661 = vmatprep.subr.mxu0 0.0
    %1662 = vmatpush1.msra.mxu0 0.0
    %1663 = vmatprep.subr.mxu0 0.0
    %1664 = vmatpush1.msra.mxu0 0.0
    %1665 = vmatprep.subr.mxu0 0.0
    %1666 = vmatpush1.msra.mxu0 0.0
    %1667 = vmatprep.subr.mxu0 0.0
    %1668 = vmatpush1.msra.mxu0 0.0
    %1669 = vmatprep.subr.mxu0 0.0
    %1670 = vmatpush1.msra.mxu0 0.0
    %1671 = vmatprep.subr.mxu0 0.0
    %1672 = vmatpush1.msra.mxu0 0.0
    %1673 = vmatprep.subr.mxu0 0.0
    %1674 = vmatpush1.msra.mxu0 0.0
    %1675 = vmatprep.subr.mxu0 0.0
    %1676 = vmatpush1.msra.mxu0 0.0
    %1677 = vmatprep.subr.mxu0 0.0
    %1678 = vmatpush1.msra.mxu0 0.0
    %1679 = vmatprep.subr.mxu0 0.0
    %1680 = vmatpush1.msra.mxu0 0.0
    %1681 = vmatprep.subr.mxu0 0.0
    %1682 = vmatpush1.msra.mxu0 0.0
    %1683 = vmatprep.subr.mxu0 0.0
    %1684 = vmatpush1.msra.mxu0 0.0
    %1685 = vmatprep.subr.mxu0 0.0
    %1686 = vmatpush1.msra.mxu0 0.0
    %1687 = vmatprep.subr.mxu0 0.0
    %1688 = vmatpush1.msra.mxu0 0.0
    %1689 = vmatprep.mubr.f32.mxu0 0.0
    %1690 = vmatmul.mubr.f32.gmra.mrb[0].mxu0 %v1617
    %v1691 = vpop.f32.mrb[0].mxu0
    %v1692 = vadd.f32 0.0, %v1691
    %v1693 = vpop.f32.mrb[0].mxu0
    %1694 = vmatprep.mubr.f32.mxu0 0.0
    %1695 = vmatmul.mubr.f32.gmra.mrb[0].mxu0 %v1620
    %v1696 = vpop.f32.mrb[0].mxu0
    %v1697 = vadd.f32 0.0, %v1696
    %v1698 = vpop.f32.mrb[0].mxu0
    %1699 = vmatprep.mubr.f32.mxu0 0.0
    %1700 = vmatmul.mubr.f32.gmra.mrb[0].mxu0 %v1623
    %v1701 = vpop.f32.mrb[0].mxu0
    %v1702 = vadd.f32 0.0, %v1701
    %v1703 = vpop.f32.mrb[0].mxu0
    %1704 = vdwg.mxu0
    %v1705 = vld [vmem:[%s10] sm:$0xff]
    %v1706 = vld [vmem:[%s10 + $0x8] sm:$0xff]
    %v1707 = vld [vmem:[%s10 + $0x10] sm:$0xff]
    %v1708 = vld [vmem:[%s10 + $0x18] sm:$0xff]
    %s1709 = scalar_lea.vmem %s10, 32
    %v1710 = vld [vmem:[%s1709] sm:$0xff]
    %v1711 = vld [vmem:[%s1709 + $0x8] sm:$0xff]
    %v1712 = vld [vmem:[%s1709 + $0x10] sm:$0xff]
    %v1713 = vld [vmem:[%s1709 + $0x18] sm:$0xff]
    %v1715 = vsel %vm93, %v1697, 0
    %1717 = vmatprep.subr.mxu0 0.0
    %1718 = vmatpush1.msra.mxu0 %v1710
    %1719 = vmatprep.subr.mxu0 0.0
    %1720 = vmatpush1.msra.mxu0 %v1711
    %1721 = vmatprep.subr.mxu0 0.0
    %1722 = vmatpush1.msra.mxu0 %v1712
    %1723 = vmatprep.subr.mxu0 0.0
    %1724 = vmatpush1.msra.mxu0 %v1713
    %1725 = vmatprep.subr.mxu0 0.0
    %1726 = vmatpush1.msra.mxu0 0.0
    %1727 = vmatprep.subr.mxu0 0.0
    %1728 = vmatpush1.msra.mxu0 0.0
    %1729 = vmatprep.subr.mxu0 0.0
    %1730 = vmatpush1.msra.mxu0 0.0
    %1731 = vmatprep.subr.mxu0 0.0
    %1732 = vmatpush1.msra.mxu0 0.0
    %1733 = vmatprep.subr.mxu0 0.0
    %1734 = vmatpush1.msra.mxu0 0.0
    %1735 = vmatprep.subr.mxu0 0.0
    %1736 = vmatpush1.msra.mxu0 0.0
    %1737 = vmatprep.subr.mxu0 0.0
    %1738 = vmatpush1.msra.mxu0 0.0
    %1739 = vmatprep.subr.mxu0 0.0
    %1740 = vmatpush1.msra.mxu0 0.0
    %1741 = vmatprep.subr.mxu0 0.0
    %1742 = vmatpush1.msra.mxu0 0.0
    %1743 = vmatprep.subr.mxu0 0.0
    %1744 = vmatpush1.msra.mxu0 0.0
    %1745 = vmatprep.subr.mxu0 0.0
    %1746 = vmatpush1.msra.mxu0 0.0
    %1747 = vmatprep.subr.mxu0 0.0
    %1748 = vmatpush1.msra.mxu0 0.0
    %1749 = vmatprep.subr.mxu0 0.0
    %1750 = vmatpush1.msra.mxu0 0.0
    %1751 = vmatprep.subr.mxu0 0.0
    %1752 = vmatpush1.msra.mxu0 0.0
    %1753 = vmatprep.subr.mxu0 0.0
    %1754 = vmatpush1.msra.mxu0 0.0
    %1755 = vmatprep.subr.mxu0 0.0
    %1756 = vmatpush1.msra.mxu0 0.0
    %1757 = vmatprep.subr.mxu0 0.0
    %1758 = vmatpush1.msra.mxu0 0.0
    %1759 = vmatprep.subr.mxu0 0.0
    %1760 = vmatpush1.msra.mxu0 0.0
    %1761 = vmatprep.subr.mxu0 0.0
    %1762 = vmatpush1.msra.mxu0 0.0
    %1763 = vmatprep.subr.mxu0 0.0
    %1764 = vmatpush1.msra.mxu0 0.0
    %1765 = vmatprep.subr.mxu0 0.0
    %1766 = vmatpush1.msra.mxu0 0.0
    %1767 = vmatprep.subr.mxu0 0.0
    %1768 = vmatpush1.msra.mxu0 0.0
    %1769 = vmatprep.subr.mxu0 0.0
    %1770 = vmatpush1.msra.mxu0 0.0
    %1771 = vmatprep.subr.mxu0 0.0
    %1772 = vmatpush1.msra.mxu0 0.0
    %1773 = vmatprep.subr.mxu0 0.0
    %1774 = vmatpush1.msra.mxu0 0.0
    %1775 = vmatprep.subr.mxu0 0.0
    %1776 = vmatpush1.msra.mxu0 0.0
    %1777 = vmatprep.subr.mxu0 0.0
    %1778 = vmatpush1.msra.mxu0 0.0
    %1779 = vmatprep.subr.mxu0 0.0
    %1780 = vmatpush1.msra.mxu0 0.0
    %1781 = vmatprep.mubr.f32.mxu0 0.0
    %1782 = vmatmul.mubr.f32.gmra.mrb[0].mxu0 %v1715
    %v1783 = vpop.f32.mrb[0].mxu0
    %v1784 = vadd.f32 0.0, %v1783
    %v1785 = vpop.f32.mrb[0].mxu0
    %1786 = vdwg.mxu0
    %v1788 = vsel %vm93, %v1692, 0
    %1790 = vmatprep.subr.mxu0 0.0
    %1791 = vmatpush1.msra.mxu0 %v1705
    %1792 = vmatprep.subr.mxu0 0.0
    %1793 = vmatpush1.msra.mxu0 %v1706
    %1794 = vmatprep.subr.mxu0 0.0
    %1795 = vmatpush1.msra.mxu0 %v1707
    %1796 = vmatprep.subr.mxu0 0.0
    %1797 = vmatpush1.msra.mxu0 %v1708
    %1798 = vmatprep.subr.mxu0 0.0
    %1799 = vmatpush1.msra.mxu0 0.0
    %1800 = vmatprep.subr.mxu0 0.0
    %1801 = vmatpush1.msra.mxu0 0.0
    %1802 = vmatprep.subr.mxu0 0.0
    %1803 = vmatpush1.msra.mxu0 0.0
    %1804 = vmatprep.subr.mxu0 0.0
    %1805 = vmatpush1.msra.mxu0 0.0
    %1806 = vmatprep.subr.mxu0 0.0
    %1807 = vmatpush1.msra.mxu0 0.0
    %1808 = vmatprep.subr.mxu0 0.0
    %1809 = vmatpush1.msra.mxu0 0.0
    %1810 = vmatprep.subr.mxu0 0.0
    %1811 = vmatpush1.msra.mxu0 0.0
    %1812 = vmatprep.subr.mxu0 0.0
    %1813 = vmatpush1.msra.mxu0 0.0
    %1814 = vmatprep.subr.mxu0 0.0
    %1815 = vmatpush1.msra.mxu0 0.0
    %1816 = vmatprep.subr.mxu0 0.0
    %1817 = vmatpush1.msra.mxu0 0.0
    %1818 = vmatprep.subr.mxu0 0.0
    %1819 = vmatpush1.msra.mxu0 0.0
    %1820 = vmatprep.subr.mxu0 0.0
    %1821 = vmatpush1.msra.mxu0 0.0
    %1822 = vmatprep.subr.mxu0 0.0
    %1823 = vmatpush1.msra.mxu0 0.0
    %1824 = vmatprep.subr.mxu0 0.0
    %1825 = vmatpush1.msra.mxu0 0.0
    %1826 = vmatprep.subr.mxu0 0.0
    %1827 = vmatpush1.msra.mxu0 0.0
    %1828 = vmatprep.subr.mxu0 0.0
    %1829 = vmatpush1.msra.mxu0 0.0
    %1830 = vmatprep.subr.mxu0 0.0
    %1831 = vmatpush1.msra.mxu0 0.0
    %1832 = vmatprep.subr.mxu0 0.0
    %1833 = vmatpush1.msra.mxu0 0.0
    %1834 = vmatprep.subr.mxu0 0.0
    %1835 = vmatpush1.msra.mxu0 0.0
    %1836 = vmatprep.subr.mxu0 0.0
    %1837 = vmatpush1.msra.mxu0 0.0
    %1838 = vmatprep.subr.mxu0 0.0
    %1839 = vmatpush1.msra.mxu0 0.0
    %1840 = vmatprep.subr.mxu0 0.0
    %1841 = vmatpush1.msra.mxu0 0.0
    %1842 = vmatprep.subr.mxu0 0.0
    %1843 = vmatpush1.msra.mxu0 0.0
    %1844 = vmatprep.subr.mxu0 0.0
    %1845 = vmatpush1.msra.mxu0 0.0
    %1846 = vmatprep.subr.mxu0 0.0
    %1847 = vmatpush1.msra.mxu0 0.0
    %1848 = vmatprep.subr.mxu0 0.0
    %1849 = vmatpush1.msra.mxu0 0.0
    %1850 = vmatprep.subr.mxu0 0.0
    %1851 = vmatpush1.msra.mxu0 0.0
    %1852 = vmatprep.subr.mxu0 0.0
    %1853 = vmatpush1.msra.mxu0 0.0
    %1854 = vmatprep.mubr.f32.mxu0 0.0
    %1855 = vmatmul.mubr.f32.gmra.mrb[0].mxu0 %v1788
    %v1856 = vpop.f32.mrb[0].mxu0
    %v1857 = vadd.f32 %v1784, %v1856
    %v1858 = vpop.f32.mrb[0].mxu0
    %1859 = vdwg.mxu0
    %s1860 = scalar_lea.vmem %s10, 64
    %v1861 = vld [vmem:[%s1860] sm:$0xff]
    %v1862 = vld [vmem:[%s1860 + $0x8] sm:$0xff]
    %v1863 = vld [vmem:[%s1860 + $0x10] sm:$0xff]
    %v1864 = vld [vmem:[%s1860 + $0x18] sm:$0xff]
    %v1866 = vsel %vm93, %v1702, 0
    %1868 = vmatprep.subr.mxu0 0.0
    %1869 = vmatpush1.msra.mxu0 %v1861
    %1870 = vmatprep.subr.mxu0 0.0
    %1871 = vmatpush1.msra.mxu0 %v1862
    %1872 = vmatprep.subr.mxu0 0.0
    %1873 = vmatpush1.msra.mxu0 %v1863
    %1874 = vmatprep.subr.mxu0 0.0
    %1875 = vmatpush1.msra.mxu0 %v1864
    %1876 = vmatprep.subr.mxu0 0.0
    %1877 = vmatpush1.msra.mxu0 0.0
    %1878 = vmatprep.subr.mxu0 0.0
    %1879 = vmatpush1.msra.mxu0 0.0
    %1880 = vmatprep.subr.mxu0 0.0
    %1881 = vmatpush1.msra.mxu0 0.0
    %1882 = vmatprep.subr.mxu0 0.0
    %1883 = vmatpush1.msra.mxu0 0.0
    %1884 = vmatprep.subr.mxu0 0.0
    %1885 = vmatpush1.msra.mxu0 0.0
    %1886 = vmatprep.subr.mxu0 0.0
    %1887 = vmatpush1.msra.mxu0 0.0
    %1888 = vmatprep.subr.mxu0 0.0
    %1889 = vmatpush1.msra.mxu0 0.0
    %1890 = vmatprep.subr.mxu0 0.0
    %1891 = vmatpush1.msra.mxu0 0.0
    %1892 = vmatprep.subr.mxu0 0.0
    %1893 = vmatpush1.msra.mxu0 0.0
    %1894 = vmatprep.subr.mxu0 0.0
    %1895 = vmatpush1.msra.mxu0 0.0
    %1896 = vmatprep.subr.mxu0 0.0
    %1897 = vmatpush1.msra.mxu0 0.0
    %1898 = vmatprep.subr.mxu0 0.0
    %1899 = vmatpush1.msra.mxu0 0.0
    %1900 = vmatprep.subr.mxu0 0.0
    %1901 = vmatpush1.msra.mxu0 0.0
    %1902 = vmatprep.subr.mxu0 0.0
    %1903 = vmatpush1.msra.mxu0 0.0
    %1904 = vmatprep.subr.mxu0 0.0
    %1905 = vmatpush1.msra.mxu0 0.0
    %1906 = vmatprep.subr.mxu0 0.0
    %1907 = vmatpush1.msra.mxu0 0.0
    %1908 = vmatprep.subr.mxu0 0.0
    %1909 = vmatpush1.msra.mxu0 0.0
    %1910 = vmatprep.subr.mxu0 0.0
    %1911 = vmatpush1.msra.mxu0 0.0
    %1912 = vmatprep.subr.mxu0 0.0
    %1913 = vmatpush1.msra.mxu0 0.0
    %1914 = vmatprep.subr.mxu0 0.0
    %1915 = vmatpush1.msra.mxu0 0.0
    %1916 = vmatprep.subr.mxu0 0.0
    %1917 = vmatpush1.msra.mxu0 0.0
    %1918 = vmatprep.subr.mxu0 0.0
    %1919 = vmatpush1.msra.mxu0 0.0
    %1920 = vmatprep.subr.mxu0 0.0
    %1921 = vmatpush1.msra.mxu0 0.0
    %1922 = vmatprep.subr.mxu0 0.0
    %1923 = vmatpush1.msra.mxu0 0.0
    %1924 = vmatprep.subr.mxu0 0.0
    %1925 = vmatpush1.msra.mxu0 0.0
    %1926 = vmatprep.subr.mxu0 0.0
    %1927 = vmatpush1.msra.mxu0 0.0
    %1928 = vmatprep.subr.mxu0 0.0
    %1929 = vmatpush1.msra.mxu0 0.0
    %1930 = vmatprep.subr.mxu0 0.0
    %1931 = vmatpush1.msra.mxu0 0.0
    %1932 = vmatprep.mubr.f32.mxu0 0.0
    %1933 = vmatmul.mubr.f32.gmra.mrb[0].mxu0 %v1866
    %v1934 = vpop.f32.mrb[0].mxu0
    %v1935 = vadd.f32 0.0, %v1934
    %v1936 = vpop.f32.mrb[0].mxu0
    %1937 = vdwg.mxu0
    %v1938 = vadd.f32 %v1857, %v1935
    %v1939 = vld [vmem:[#allocation6] sm:$0x1]
    %v1941 = vlaneseq
    %v1942 = vshrl.u32 %v1941, 7
    %v1943 = vsub.s32 0, %v1942
    %v1944 = vrot.slane %v1939, %v1943
    %v1946 = vadd.f32 %v1938, %v1944
    %vm1947 = vcmask 64512
    %1948 = vst.msk [vmem:[#allocation8] sm:$0xff] %vm1947, %v1946
    // Predicated region
    $region58: #{text_base_model_forward.1} parent=1 // pred_check
      _
    $region59: #{text_base_model_forward.1} parent=1 // pred_check_branch
      %1950 = sbr.rel (0) target = $region61
    $region60: #{text_base_model_forward.1} parent=1 // pred_region
      %s1952 = ssub.s32 128, 128
      %1953 = vsyncadd [#allocation5], %s1952
      %s1955 = sshll.u32 [#allocation8], 4
      %s1956 = int_to_ptr.vmem [resolvable:$true] %s1955
      %1958 = dma.vmem_to_hbm [thread:$0]  %s1956, 128, %s12, [#allocation5]
    $region61: #{text_base_model_forward.1} parent=1 // pred_fallthru
      _
    // Predicated region
    $region62: #{text_base_model_forward.1} parent=1 // pred_check
      _
    $region63: #{text_base_model_forward.1} parent=1 // pred_check_branch
      %1960 = sbr.rel (0) target = $region65
    $region64: #{text_base_model_forward.1} parent=1 // pred_region
      %1961 = dma.done [#allocation5], 128
    $region65: #{text_base_model_forward.1} parent=1 // pred_fallthru
      _
    %1962 = vsyncpa [#allocation4], 1
    %1963 = vsyncpa [#allocation7], 1
    %1964 = vsyncpa [#allocation5], 1

</llo_original>
